<compile_context>
chip_gen: v7x
topology: tpu7x:2x2x1
jax: 0.10.0
libtpu: 0.0.40
codegen_flags: <defaults>
</compile_context>

<pallas_src>
import jax
import jax.numpy as jnp
from jax.experimental import pallas as pl
from jax.experimental.pallas import tpu as pltpu


def _round_up(x, m):
    return ((x + m - 1) // m) * m


def _mlp_kernel(x_ref, w1_ref, b1_ref, w2_ref, b2_ref, o_ref):
    # Cast the streamed activation tile to the MXU compute dtype *inside* the
    # kernel (x stays in its native dtype in HBM: one read, no wrapper cast pass).
    x = x_ref[...].astype(w1_ref.dtype)
    # hidden = relu(x @ W1 + b1): bf16 MXU matmul, f32 accumulation,
    # bias add + ReLU on the VPU in f32.
    h = jnp.dot(x, w1_ref[...], preferred_element_type=jnp.float32)
    h = jnp.maximum(h + b1_ref[...], 0.0)                       # (bm, H) f32
    # logits = hidden @ W2 + b2: W2 padded to a lane-dense 128-wide output so
    # this is a clean (bm, H) x (H, 128) MXU matmul and an unmasked 128-lane store.
    out = jnp.dot(h.astype(w2_ref.dtype), w2_ref[...],
                  preferred_element_type=jnp.float32)
    o_ref[...] = (out + b2_ref[...]).astype(o_ref.dtype)


def _choose_bm(batch, block_m):
    """Pick the batch tile.

    * large batches: MXU-row-aligned tiles (multiples of 128, default 1024) to
      amortize the ~0.35us/step grid overhead,
    * >= 2 grid steps whenever the batch is big enough so the v7x megacore can
      split the 'parallel' batch axis across both TensorCores,
    * tiny batches: one full-extent tile (legal for any B, zero padding).
    """
    batch = max(batch, 1)
    bm = max(128, (block_m // 128) * 128)
    if batch <= bm:
        if batch > 256:
            return _round_up(pl.cdiv(batch, 2), 128)   # 2 steps for v7x megacore
        return batch                                   # single full-extent tile
    return bm


def wsi_linear_classifier(x, w1, b1, w2, b2, *, block_m=1024,
                          compute_dtype=jnp.bfloat16):
    """Fused WSILinearClassifier head: relu(x @ W1 + b1) @ W2 + b2.

    x  : (B, feature_dim)            (f32 or bf16; cast to bf16 in-kernel)
    w1 : (feature_dim, hidden)       b1 : (hidden,)
    w2 : (hidden, num_classes)       b2 : (num_classes,)
    returns (B, num_classes), same dtype as x.
    """
    B, F = x.shape
    H = w1.shape[1]
    C = w2.shape[1]

    bm = _choose_bm(B, block_m)
    grid = (pl.cdiv(B, bm),)          # ragged last block handled by Pallas masking
    C_pad = _round_up(C, 128)         # lane-dense output (unmasked 128-wide vst)

    # Weight-side glue (tiny, one-time): class padding + bf16 MXU operands.
    w1_c = w1.astype(compute_dtype)
    w2_p = jnp.pad(w2, ((0, 0), (0, C_pad - C))) if C_pad != C else w2
    b2_p = jnp.pad(b2, ((0, C_pad - C),)) if C_pad != C else b2
    w2_c = w2_p.astype(compute_dtype)
    b1_2d = b1.reshape(1, H).astype(jnp.float32)
    b2_2d = b2_p.reshape(1, C_pad).astype(jnp.float32)

    out_dtype = x.dtype
    x_item = jnp.dtype(x.dtype).itemsize
    o_item = jnp.dtype(out_dtype).itemsize
    c_item = jnp.dtype(compute_dtype).itemsize

    flops = 2 * B * (F * H + H * C_pad)
    bytes_accessed = (B * F * x_item
                      + F * H * c_item + H * C_pad * c_item
                      + (H + C_pad) * 4
                      + B * C_pad * o_item)

    # Scoped-VMEM footprint estimate (double-buffered tiles + resident weights);
    # raise the scoped limit only as far as needed, capped at v7x's 64 MiB physical.
    vmem_est = (2 * bm * F * x_item            # x tiles (double-buffered)
                + 2 * bm * C_pad * o_item      # out tiles
                + 2 * (F * H * c_item + H * C_pad * c_item + (H + C_pad) * 4))
    vmem_limit = int(min(64 * 2**20, max(32 * 2**20, vmem_est + 4 * 2**20)))

    out = pl.pallas_call(
        _mlp_kernel,
        out_shape=jax.ShapeDtypeStruct((B, C_pad), out_dtype),
        grid_spec=pltpu.PrefetchScalarGridSpec(
            num_scalar_prefetch=0,
            grid=grid,
            in_specs=[
                pl.BlockSpec((bm, F), lambda i: (i, 0)),      # x tile (streams)
                # Constant index_map => Pallas keeps these VMEM-resident and
                # does not re-issue their HBM DMA on later grid steps.
                pl.BlockSpec((F, H), lambda i: (0, 0)),       # W1
                pl.BlockSpec((1, H), lambda i: (0, 0)),       # b1
                pl.BlockSpec((H, C_pad), lambda i: (0, 0)),   # W2 (class-padded)
                pl.BlockSpec((1, C_pad), lambda i: (0, 0)),   # b2 (class-padded)
            ],
            out_specs=pl.BlockSpec((bm, C_pad), lambda i: (i, 0)),
        ),
        compiler_params=pltpu.CompilerParams(
            dimension_semantics=("parallel",),
            vmem_limit_bytes=vmem_limit),
        cost_estimate=pl.CostEstimate(flops=flops,
                                      bytes_accessed=bytes_accessed,
                                      transcendentals=0),
    )(x, w1_c, b1_2d, w2_c, b2_2d)
    return out[:, :C]


def _init_linear_params(key, in_features, out_features, dtype=jnp.float32):
    """Deterministic PyTorch-style init: U(-1/sqrt(fan_in), 1/sqrt(fan_in))."""
    k_w, k_b = jax.random.split(key)
    bound = 1.0 / (in_features ** 0.5)
    # PyTorch stores weight as (out, in); transposed to (in, out) by the caller.
    w = jax.random.uniform(k_w, (out_features, in_features), dtype,
                           minval=-bound, maxval=bound)
    b = jax.random.uniform(k_b, (out_features,), dtype,
                           minval=-bound, maxval=bound)
    return w, b


def reference_forward_f32(x, w1_t, b1, w2_t, b2):
    """Plain-JAX f32 reference mirroring nn.Sequential(Linear, ReLU, Linear)."""
    h = jnp.maximum(x @ w1_t.T + b1, 0.0)
    return h @ w2_t.T + b2


def reference_forward_matched(x, w1_t, b1, w2_t, b2):
    """Reference with the same bf16-in / f32-acc precision as the kernel."""
    h = jnp.dot(x.astype(jnp.bfloat16), w1_t.T.astype(jnp.bfloat16),
                preferred_element_type=jnp.float32) + b1
    h = jnp.maximum(h, 0.0)
    out = jnp.dot(h.astype(jnp.bfloat16), w2_t.T.astype(jnp.bfloat16),
                  preferred_element_type=jnp.float32) + b2
    return out


if __name__ == "__main__":
    # Module config: backbone='dino' -> feature_dim=768, num_classes=2.
    feature_dim = 768
    hidden = 512
    num_classes = 2
    batch = 200  # arbitrary WSI bag size (not a multiple of any tile)

    root = jax.random.PRNGKey(0)
    k_x, k_l1, k_l2 = jax.random.split(root, 3)

    x = jax.random.normal(k_x, (batch, feature_dim), jnp.float32)
    w1_pt, b1 = _init_linear_params(k_l1, feature_dim, hidden)   # (512, 768)
    w2_pt, b2 = _init_linear_params(k_l2, hidden, num_classes)   # (2, 512)

    # Glue: transpose PyTorch-convention weights to (in, out) for the kernel.
    w1 = w1_pt.T  # (768, 512)
    w2 = w2_pt.T  # (512, 2)

    ref_f32 = reference_forward_f32(x, w1_pt, b1, w2_pt, b2)
    ref_bf16 = reference_forward_matched(x, w1_pt, b1, w2_pt, b2)

    # Path 1: default block_m -> single full-extent tile (tiny-batch path).
    out1 = jax.block_until_ready(wsi_linear_classifier(x, w1, b1, w2, b2))
    # Path 2: block_m=128 -> 2 grid steps with a ragged, masked last block.
    out2 = jax.block_until_ready(
        wsi_linear_classifier(x, w1, b1, w2, b2, block_m=128))

    for out in (out1, out2):
        assert out.shape == (batch, num_classes)
        err_f32 = float(jnp.max(jnp.abs(out - ref_f32)))
        assert err_f32 < 5e-2, f"mismatch vs f32 reference: max abs err {err_f32}"
        err_bf16 = float(jnp.max(jnp.abs(out - ref_bf16)))
        assert err_bf16 < 1e-2, f"mismatch vs matched-precision ref: {err_bf16}"

    print("KERNEL_OK")
</pallas_src>

<mosaic_0001>
module attributes {stable_mosaic.version = 11 : i64} {
  func.func @_mlp_kernel(%arg0: i32, %arg1: memref<200x768xf32, #tpu.memory_space<vmem>>, %arg2: memref<768x512xbf16, #tpu.memory_space<vmem>>, %arg3: memref<1x512xf32, #tpu.memory_space<vmem>>, %arg4: memref<512x128xbf16, #tpu.memory_space<vmem>>, %arg5: memref<1x128xf32, #tpu.memory_space<vmem>>, %arg6: memref<200x128xf32, #tpu.memory_space<vmem>>) attributes {dimension_semantics = [#tpu.dimension_semantics<parallel>], iteration_bounds = array<i64: 1>, scalar_prefetch = 0 : i64, scratch_operands = 0 : i64, tpu.core_type = #tpu.core_type<tc>, window_params = [{transform_indices = @transform_0, window_bounds = array<i64: 200, 768>}, {pipeline_mode = #tpu.pipeline_mode<synchronous>, transform_indices = @transform_1, window_bounds = array<i64: 768, 512>}, {pipeline_mode = #tpu.pipeline_mode<synchronous>, transform_indices = @transform_2, window_bounds = array<i64: 1, 512>}, {pipeline_mode = #tpu.pipeline_mode<synchronous>, transform_indices = @transform_3, window_bounds = array<i64: 512, 128>}, {pipeline_mode = #tpu.pipeline_mode<synchronous>, transform_indices = @transform_4, window_bounds = array<i64: 1, 128>}, {transform_indices = @transform_5, window_bounds = array<i64: 200, 128>}]} {
    %c0 = arith.constant 0 : index
    %c0_0 = arith.constant 0 : index
    %0 = vector.load %arg1[%c0, %c0_0] : memref<200x768xf32, #tpu.memory_space<vmem>>, vector<200x768xf32>
    %1 = arith.truncf %0 : vector<200x768xf32> to vector<200x768xbf16>
    %c0_1 = arith.constant 0 : index
    %c0_2 = arith.constant 0 : index
    %2 = vector.load %arg2[%c0_1, %c0_2] : memref<768x512xbf16, #tpu.memory_space<vmem>>, vector<768x512xbf16>
    %cst = arith.constant dense<0.000000e+00> : vector<200x512xf32>
    %3 = tpu.matmul %1, %2, %cst {dimension_numbers = #tpu.dot_dimension_numbers<[1], [0], [0], [1], [0, 0, 1, 1], [], []>} : vector<200x768xbf16>, vector<768x512xbf16>, vector<200x512xf32> -> vector<200x512xf32>
    %c0_3 = arith.constant 0 : index
    %c0_4 = arith.constant 0 : index
    %4 = vector.load %arg3[%c0_3, %c0_4] : memref<1x512xf32, #tpu.memory_space<vmem>>, vector<1x512xf32>
    %5 = vector.broadcast %4 : vector<1x512xf32> to vector<200x512xf32>
    %6 = arith.addf %3, %5 : vector<200x512xf32>
    %cst_5 = arith.constant 0.000000e+00 : f32
    %7 = vector.broadcast %cst_5 : f32 to vector<200x512xf32>
    %8 = arith.maximumf %6, %7 : vector<200x512xf32>
    %9 = arith.truncf %8 : vector<200x512xf32> to vector<200x512xbf16>
    %c0_6 = arith.constant 0 : index
    %c0_7 = arith.constant 0 : index
    %10 = vector.load %arg4[%c0_6, %c0_7] : memref<512x128xbf16, #tpu.memory_space<vmem>>, vector<512x128xbf16>
    %cst_8 = arith.constant dense<0.000000e+00> : vector<200x128xf32>
    %11 = tpu.matmul %9, %10, %cst_8 {dimension_numbers = #tpu.dot_dimension_numbers<[1], [0], [0], [1], [0, 0, 1, 1], [], []>} : vector<200x512xbf16>, vector<512x128xbf16>, vector<200x128xf32> -> vector<200x128xf32>
    %c0_9 = arith.constant 0 : index
    %c0_10 = arith.constant 0 : index
    %12 = vector.load %arg5[%c0_9, %c0_10] : memref<1x128xf32, #tpu.memory_space<vmem>>, vector<1x128xf32>
    %13 = vector.broadcast %12 : vector<1x128xf32> to vector<200x128xf32>
    %14 = arith.addf %11, %13 : vector<200x128xf32>
    %c0_11 = arith.constant 0 : index
    %c0_12 = arith.constant 0 : index
    %15 = vector.load %arg6[%c0_11, %c0_12] : memref<200x128xf32, #tpu.memory_space<vmem>>, vector<200x128xf32>
    tpu.vector_store %arg6[%c0_11, %c0_12], %14 {strides = array<i32>} : memref<200x128xf32, #tpu.memory_space<vmem>>, vector<200x128xf32>,
    return
  }
  func.func @transform_0(%arg0: i32) -> (i32, i32) {
    %c0_i32 = arith.constant 0 : i32
    %c0_i32_0 = arith.constant 0 : i32
    return %arg0, %c0_i32 : i32, i32
  }
  func.func @transform_1(%arg0: i32) -> (i32, i32) {
    %c0_i32 = arith.constant 0 : i32
    %c0_i32_0 = arith.constant 0 : i32
    %c0_i32_1 = arith.constant 0 : i32
    return %c0_i32, %c0_i32_0 : i32, i32
  }
  func.func @transform_2(%arg0: i32) -> (i32, i32) {
    %c0_i32 = arith.constant 0 : i32
    %c0_i32_0 = arith.constant 0 : i32
    %c0_i32_1 = arith.constant 0 : i32
    return %c0_i32, %c0_i32_0 : i32, i32
  }
  func.func @transform_3(%arg0: i32) -> (i32, i32) {
    %c0_i32 = arith.constant 0 : i32
    %c0_i32_0 = arith.constant 0 : i32
    %c0_i32_1 = arith.constant 0 : i32
    return %c0_i32, %c0_i32_0 : i32, i32
  }
  func.func @transform_4(%arg0: i32) -> (i32, i32) {
    %c0_i32 = arith.constant 0 : i32
    %c0_i32_0 = arith.constant 0 : i32
    %c0_i32_1 = arith.constant 0 : i32
    return %c0_i32, %c0_i32_0 : i32, i32
  }
  func.func @transform_5(%arg0: i32) -> (i32, i32) {
    %c0_i32 = arith.constant 0 : i32
    %c0_i32_0 = arith.constant 0 : i32
    return %arg0, %c0_i32 : i32, i32
  }
}

</mosaic_0001>

<llo_original>
// kernel: tpu_custom_call.1
$region0: #{tpu_custom_call.1}
  #allocation0 [shape = 'u32[]', space=smem, size = 0x4, offset = 0x4, fixed_abs, tag = 'smem constant byte address 0x4 - core index']
  #allocation1 [shape = 'u32[144,128]{1,0:T(1,128)}', space=vmem, size = 0x12000, scoped, tag = 'internal scratch']
  %s0 = inlined_call_operand.hbm [shape: f32[200,768], index: 0, kind: input, shape index: {}]
  %s1 = inlined_call_operand.hbm [shape: bf16[768,512], index: 1, kind: input, shape index: {}]
  %s2 = inlined_call_operand.vmem [shape: f32[1,512], index: 2, kind: input, shape index: {}]
  %s3 = inlined_call_operand.hbm [shape: bf16[512,128], index: 3, kind: input, shape index: {}]
  %s4 = inlined_call_operand.vmem [shape: f32[1,128], index: 4, kind: input, shape index: {}]
  %s5 = inlined_call_operand.hbm [shape: f32[200,128], index: 5, kind: output, shape index: {}]
  %s6 = sld [smem:[#allocation0]]
  $region42: #{tpu_custom_call.1} parent=0
    _
  %s8 = ssub.s32 1, %s6
  %s9 = scalar_select 0, %s8, %s6
  $region1: #{tpu_custom_call.1} parent=0
    #allocation2 [shape = 'u8[614400]{0}', space=vmem, size = 0x96000, scoped, tag = 'input window, operand 0, single buffered']
    #allocation3 [shape = 's32[1]{0}', space=sflag, size = 0x4, scoped, tag = 'scoped memory for tpu_custom_call.1']
    #allocation4 [shape = 's32[1]{0}', space=sflag, size = 0x4, scoped, tag = 'scoped memory for tpu_custom_call.1']
    #allocation5 [shape = 'u8[786432]{0}', space=vmem, size = 0xc0000, scoped, tag = 'input window, operand 1, single buffered']
    #allocation6 [shape = 's32[1]{0}', space=sflag, size = 0x4, scoped, tag = 'scoped memory for tpu_custom_call.1']
    #allocation7 [shape = 'u8[131072]{0}', space=vmem, size = 0x20000, scoped, tag = 'input window, operand 3, single buffered']
    #allocation8 [shape = 'u8[102400]{0}', space=vmem, size = 0x19000, scoped, tag = 'output window, operand 0, single buffered']
    %10 = vsyncpa [#allocation3], 0
    %11 = vsyncpa [#allocation6], 0
    %12 = vsyncpa [#allocation4], 0
    // Predicated region
    $region2: #{tpu_custom_call.1} parent=1 // pred_check
      _
    $region3: #{tpu_custom_call.1} parent=1 // pred_check_branch
      %14 = sbr.rel (0) target = $region5
    $region4: #{tpu_custom_call.1} parent=1 // pred_region
      %s16 = ssub.s32 19200, 19200
      %17 = vsyncadd [#allocation3], %s16
      %s18 = sshll.u32 [#allocation2], 4
      %s19 = int_to_ptr.vmem [resolvable:$true] %s18
      %24 = dma.hbm_to_vmem [thread:$0]  %s0, 19200, %s19, [#allocation3], 768, 768, 48
    $region5: #{tpu_custom_call.1} parent=1 // pred_fallthru
      _
    // Predicated region
    $region6: #{tpu_custom_call.1} parent=1 // pred_check
      _
    $region7: #{tpu_custom_call.1} parent=1 // pred_check_branch
      %26 = sbr.rel (0) target = $region9
    $region8: #{tpu_custom_call.1} parent=1 // pred_region
      %s28 = ssub.s32 24576, 24576
      %29 = vsyncadd [#allocation6], %s28
      %s30 = sshll.u32 [#allocation5], 4
      %s31 = int_to_ptr.vmem [resolvable:$true] %s30
      %36 = dma.hbm_to_vmem [thread:$0]  %s1, 24576, %s31, [#allocation6], 256, 256, 16
    $region9: #{tpu_custom_call.1} parent=1 // pred_fallthru
      _
    // Predicated region
    $region10: #{tpu_custom_call.1} parent=1 // pred_check
      _
    $region11: #{tpu_custom_call.1} parent=1 // pred_check_branch
      %38 = sbr.rel (0) target = $region13
    $region12: #{tpu_custom_call.1} parent=1 // pred_region
      _
    $region13: #{tpu_custom_call.1} parent=1 // pred_fallthru
      _
    // Predicated region
    $region14: #{tpu_custom_call.1} parent=1 // pred_check
      _
    $region15: #{tpu_custom_call.1} parent=1 // pred_check_branch
      %40 = sbr.rel (0) target = $region17
    $region16: #{tpu_custom_call.1} parent=1 // pred_region
      %s42 = ssub.s32 4096, 4096
      %43 = vsyncadd [#allocation6], %s42
      %s44 = sshll.u32 [#allocation7], 4
      %s45 = int_to_ptr.vmem [resolvable:$true] %s44
      %50 = dma.hbm_to_vmem [thread:$0]  %s3, 4096, %s45, [#allocation6], 64, 64, 4
    $region17: #{tpu_custom_call.1} parent=1 // pred_fallthru
      _
    // Predicated region
    $region18: #{tpu_custom_call.1} parent=1 // pred_check
      _
    $region19: #{tpu_custom_call.1} parent=1 // pred_check_branch
      %52 = sbr.rel (0) target = $region21
    $region20: #{tpu_custom_call.1} parent=1 // pred_region
      _
    $region21: #{tpu_custom_call.1} parent=1 // pred_fallthru
      _
    // Predicated region
    $region22: #{tpu_custom_call.1} parent=1 // pred_check
      _
    $region23: #{tpu_custom_call.1} parent=1 // pred_check_branch
      %54 = sbr.rel (0) target = $region25
    $region24: #{tpu_custom_call.1} parent=1 // pred_region
      %55 = dma.done [#allocation3], 19200
    $region25: #{tpu_custom_call.1} parent=1 // pred_fallthru
      _
    // Predicated region
    $region26: #{tpu_custom_call.1} parent=1 // pred_check
      _
    $region27: #{tpu_custom_call.1} parent=1 // pred_check_branch
      %57 = sbr.rel (0) target = $region29
    $region28: #{tpu_custom_call.1} parent=1 // pred_region
      %58 = dma.done [#allocation6], 24576
    $region29: #{tpu_custom_call.1} parent=1 // pred_fallthru
      _
    // Predicated region
    $region30: #{tpu_custom_call.1} parent=1 // pred_check
      _
    $region31: #{tpu_custom_call.1} parent=1 // pred_check_branch
      %60 = sbr.rel (0) target = $region33
    $region32: #{tpu_custom_call.1} parent=1 // pred_region
      %61 = dma.done [#allocation6], 4096
    $region33: #{tpu_custom_call.1} parent=1 // pred_fallthru
      _
    %v63 = vld [vmem:[#allocation2] sm:$0xff]
    %v64 = vld [vmem:[#allocation2 + $0x8] sm:$0xff]
    %v65 = vld [vmem:[#allocation2 + $0x10] sm:$0xff]
    %v66 = vld [vmem:[#allocation2 + $0x18] sm:$0xff]
    %v67 = vld [vmem:[#allocation2 + $0x20] sm:$0xff]
    %v68 = vld [vmem:[#allocation2 + $0x28] sm:$0xff]
    %v69 = vld [vmem:[#allocation2 + $0x30] sm:$0xff]
    %v70 = vld [vmem:[#allocation2 + $0x38] sm:$0xff]
    %v71 = vld [vmem:[#allocation2 + $0x40] sm:$0xff]
    %v72 = vld [vmem:[#allocation2 + $0x48] sm:$0xff]
    %v73 = vld [vmem:[#allocation2 + $0x50] sm:$0xff]
    %v74 = vld [vmem:[#allocation2 + $0x58] sm:$0xff]
    %v75 = vld [vmem:[#allocation2 + $0x60] sm:$0xff]
    %v76 = vld [vmem:[#allocation2 + $0x68] sm:$0xff]
    %v77 = vld [vmem:[#allocation2 + $0x70] sm:$0xff]
    %v78 = vld [vmem:[#allocation2 + $0x78] sm:$0xff]
    %v79 = vld [vmem:[#allocation2 + $0x80] sm:$0xff]
    %v80 = vld [vmem:[#allocation2 + $0x88] sm:$0xff]
    %v81 = vld [vmem:[#allocation2 + $0x90] sm:$0xff]
    %v82 = vld [vmem:[#allocation2 + $0x98] sm:$0xff]
    %v83 = vld [vmem:[#allocation2 + $0xa0] sm:$0xff]
    %v84 = vld [vmem:[#allocation2 + $0xa8] sm:$0xff]
    %v85 = vld [vmem:[#allocation2 + $0xb0] sm:$0xff]
    %v86 = vld [vmem:[#allocation2 + $0xb8] sm:$0xff]
    %v87 = vld [vmem:[#allocation2 + $0xc0] sm:$0xff]
    %v88 = vld [vmem:[#allocation2 + $0xc8] sm:$0xff]
    %v89 = vld [vmem:[#allocation2 + $0xd0] sm:$0xff]
    %v90 = vld [vmem:[#allocation2 + $0xd8] sm:$0xff]
    %v91 = vld [vmem:[#allocation2 + $0xe0] sm:$0xff]
    %v92 = vld [vmem:[#allocation2 + $0xe8] sm:$0xff]
    %v93 = vld [vmem:[#allocation2 + $0xf0] sm:$0xff]
    %v94 = vld [vmem:[#allocation2 + $0xf8] sm:$0xff]
    %v95 = vld [vmem:[#allocation2 + $0x100] sm:$0xff]
    %v96 = vld [vmem:[#allocation2 + $0x108] sm:$0xff]
    %v97 = vld [vmem:[#allocation2 + $0x110] sm:$0xff]
    %v98 = vld [vmem:[#allocation2 + $0x118] sm:$0xff]
    %v99 = vld [vmem:[#allocation2 + $0x120] sm:$0xff]
    %v100 = vld [vmem:[#allocation2 + $0x128] sm:$0xff]
    %v101 = vld [vmem:[#allocation2 + $0x130] sm:$0xff]
    %v102 = vld [vmem:[#allocation2 + $0x138] sm:$0xff]
    %v103 = vld [vmem:[#allocation2 + $0x140] sm:$0xff]
    %v104 = vld [vmem:[#allocation2 + $0x148] sm:$0xff]
    %v105 = vld [vmem:[#allocation2 + $0x150] sm:$0xff]
    %v106 = vld [vmem:[#allocation2 + $0x158] sm:$0xff]
    %v107 = vld [vmem:[#allocation2 + $0x160] sm:$0xff]
    %v108 = vld [vmem:[#allocation2 + $0x168] sm:$0xff]
    %v109 = vld [vmem:[#allocation2 + $0x170] sm:$0xff]
    %v110 = vld [vmem:[#allocation2 + $0x178] sm:$0xff]
    %v111 = vld [vmem:[#allocation2 + $0x180] sm:$0xff]
    %v112 = vld [vmem:[#allocation2 + $0x188] sm:$0xff]
    %v113 = vld [vmem:[#allocation2 + $0x190] sm:$0xff]
    %v114 = vld [vmem:[#allocation2 + $0x198] sm:$0xff]
    %v115 = vld [vmem:[#allocation2 + $0x1a0] sm:$0xff]
    %v116 = vld [vmem:[#allocation2 + $0x1a8] sm:$0xff]
    %v117 = vld [vmem:[#allocation2 + $0x1b0] sm:$0xff]
    %v118 = vld [vmem:[#allocation2 + $0x1b8] sm:$0xff]
    %v119 = vld [vmem:[#allocation2 + $0x1c0] sm:$0xff]
    %v120 = vld [vmem:[#allocation2 + $0x1c8] sm:$0xff]
    %v121 = vld [vmem:[#allocation2 + $0x1d0] sm:$0xff]
    %v122 = vld [vmem:[#allocation2 + $0x1d8] sm:$0xff]
    %v123 = vld [vmem:[#allocation2 + $0x1e0] sm:$0xff]
    %v124 = vld [vmem:[#allocation2 + $0x1e8] sm:$0xff]
    %v125 = vld [vmem:[#allocation2 + $0x1f0] sm:$0xff]
    %v126 = vld [vmem:[#allocation2 + $0x1f8] sm:$0xff]
    %v127 = vld [vmem:[#allocation2 + $0x200] sm:$0xff]
    %v128 = vld [vmem:[#allocation2 + $0x208] sm:$0xff]
    %v129 = vld [vmem:[#allocation2 + $0x210] sm:$0xff]
    %v130 = vld [vmem:[#allocation2 + $0x218] sm:$0xff]
    %v131 = vld [vmem:[#allocation2 + $0x220] sm:$0xff]
    %v132 = vld [vmem:[#allocation2 + $0x228] sm:$0xff]
    %v133 = vld [vmem:[#allocation2 + $0x230] sm:$0xff]
    %v134 = vld [vmem:[#allocation2 + $0x238] sm:$0xff]
    %v135 = vld [vmem:[#allocation2 + $0x240] sm:$0xff]
    %v136 = vld [vmem:[#allocation2 + $0x248] sm:$0xff]
    %v137 = vld [vmem:[#allocation2 + $0x250] sm:$0xff]
    %v138 = vld [vmem:[#allocation2 + $0x258] sm:$0xff]
    %v139 = vld [vmem:[#allocation2 + $0x260] sm:$0xff]
    %v140 = vld [vmem:[#allocation2 + $0x268] sm:$0xff]
    %v141 = vld [vmem:[#allocation2 + $0x270] sm:$0xff]
    %v142 = vld [vmem:[#allocation2 + $0x278] sm:$0xff]
    %v143 = vld [vmem:[#allocation2 + $0x280] sm:$0xff]
    %v144 = vld [vmem:[#allocation2 + $0x288] sm:$0xff]
    %v145 = vld [vmem:[#allocation2 + $0x290] sm:$0xff]
    %v146 = vld [vmem:[#allocation2 + $0x298] sm:$0xff]
    %v147 = vld [vmem:[#allocation2 + $0x2a0] sm:$0xff]
    %v148 = vld [vmem:[#allocation2 + $0x2a8] sm:$0xff]
    %v149 = vld [vmem:[#allocation2 + $0x2b0] sm:$0xff]
    %v150 = vld [vmem:[#allocation2 + $0x2b8] sm:$0xff]
    %v151 = vld [vmem:[#allocation2 + $0x2c0] sm:$0xff]
    %v152 = vld [vmem:[#allocation2 + $0x2c8] sm:$0xff]
    %v153 = vld [vmem:[#allocation2 + $0x2d0] sm:$0xff]
    %v154 = vld [vmem:[#allocation2 + $0x2d8] sm:$0xff]
    %v155 = vld [vmem:[#allocation2 + $0x2e0] sm:$0xff]
    %v156 = vld [vmem:[#allocation2 + $0x2e8] sm:$0xff]
    %v157 = vld [vmem:[#allocation2 + $0x2f0] sm:$0xff]
    %v158 = vld [vmem:[#allocation2 + $0x2f8] sm:$0xff]
    %v159 = vld [vmem:[#allocation2 + $0x300] sm:$0xff]
    %v160 = vld [vmem:[#allocation2 + $0x308] sm:$0xff]
    %v161 = vld [vmem:[#allocation2 + $0x310] sm:$0xff]
    %v162 = vld [vmem:[#allocation2 + $0x318] sm:$0xff]
    %v163 = vld [vmem:[#allocation2 + $0x320] sm:$0xff]
    %v164 = vld [vmem:[#allocation2 + $0x328] sm:$0xff]
    %v165 = vld [vmem:[#allocation2 + $0x330] sm:$0xff]
    %v166 = vld [vmem:[#allocation2 + $0x338] sm:$0xff]
    %v167 = vld [vmem:[#allocation2 + $0x340] sm:$0xff]
    %v168 = vld [vmem:[#allocation2 + $0x348] sm:$0xff]
    %v169 = vld [vmem:[#allocation2 + $0x350] sm:$0xff]
    %v170 = vld [vmem:[#allocation2 + $0x358] sm:$0xff]
    %v171 = vld [vmem:[#allocation2 + $0x360] sm:$0xff]
    %v172 = vld [vmem:[#allocation2 + $0x368] sm:$0xff]
    %v173 = vld [vmem:[#allocation2 + $0x370] sm:$0xff]
    %v174 = vld [vmem:[#allocation2 + $0x378] sm:$0xff]
    %v175 = vld [vmem:[#allocation2 + $0x380] sm:$0xff]
    %v176 = vld [vmem:[#allocation2 + $0x388] sm:$0xff]
    %v177 = vld [vmem:[#allocation2 + $0x390] sm:$0xff]
    %v178 = vld [vmem:[#allocation2 + $0x398] sm:$0xff]
    %v179 = vld [vmem:[#allocation2 + $0x3a0] sm:$0xff]
    %v180 = vld [vmem:[#allocation2 + $0x3a8] sm:$0xff]
    %v181 = vld [vmem:[#allocation2 + $0x3b0] sm:$0xff]
    %v182 = vld [vmem:[#allocation2 + $0x3b8] sm:$0xff]
    %v183 = vld [vmem:[#allocation2 + $0x3c0] sm:$0xff]
    %v184 = vld [vmem:[#allocation2 + $0x3c8] sm:$0xff]
    %v185 = vld [vmem:[#allocation2 + $0x3d0] sm:$0xff]
    %v186 = vld [vmem:[#allocation2 + $0x3d8] sm:$0xff]
    %v187 = vld [vmem:[#allocation2 + $0x3e0] sm:$0xff]
    %v188 = vld [vmem:[#allocation2 + $0x3e8] sm:$0xff]
    %v189 = vld [vmem:[#allocation2 + $0x3f0] sm:$0xff]
    %v190 = vld [vmem:[#allocation2 + $0x3f8] sm:$0xff]
    %v191 = vld [vmem:[#allocation2 + $0x400] sm:$0xff]
    %v192 = vld [vmem:[#allocation2 + $0x408] sm:$0xff]
    %v193 = vld [vmem:[#allocation2 + $0x410] sm:$0xff]
    %v194 = vld [vmem:[#allocation2 + $0x418] sm:$0xff]
    %v195 = vld [vmem:[#allocation2 + $0x420] sm:$0xff]
    %v196 = vld [vmem:[#allocation2 + $0x428] sm:$0xff]
    %v197 = vld [vmem:[#allocation2 + $0x430] sm:$0xff]
    %v198 = vld [vmem:[#allocation2 + $0x438] sm:$0xff]
    %v199 = vld [vmem:[#allocation2 + $0x440] sm:$0xff]
    %v200 = vld [vmem:[#allocation2 + $0x448] sm:$0xff]
    %v201 = vld [vmem:[#allocation2 + $0x450] sm:$0xff]
    %v202 = vld [vmem:[#allocation2 + $0x458] sm:$0xff]
    %v203 = vld [vmem:[#allocation2 + $0x460] sm:$0xff]
    %v204 = vld [vmem:[#allocation2 + $0x468] sm:$0xff]
    %v205 = vld [vmem:[#allocation2 + $0x470] sm:$0xff]
    %v206 = vld [vmem:[#allocation2 + $0x478] sm:$0xff]
    %v207 = vld [vmem:[#allocation2 + $0x480] sm:$0xff]
    %v208 = vld [vmem:[#allocation2 + $0x488] sm:$0xff]
    %v209 = vld [vmem:[#allocation2 + $0x490] sm:$0xff]
    %v210 = vld [vmem:[#allocation2 + $0x498] sm:$0xff]
    %v211 = vld [vmem:[#allocation2 + $0x4a0] sm:$0xff]
    %v212 = vld [vmem:[#allocation2 + $0x4a8] sm:$0xff]
    %v213 = vpack.c.bf16 %v69, %v63
    %v214 = vpack.c.bf16 %v70, %v64
    %v215 = vpack.c.bf16 %v71, %v65
    %v216 = vpack.c.bf16 %v72, %v66
    %v217 = vpack.c.bf16 %v73, %v67
    %v218 = vpack.c.bf16 %v74, %v68
    %v219 = vpack.c.bf16 %v81, %v75
    %v220 = vpack.c.bf16 %v82, %v76
    %v221 = vpack.c.bf16 %v83, %v77
    %v222 = vpack.c.bf16 %v84, %v78
    %v223 = vpack.c.bf16 %v85, %v79
    %v224 = vpack.c.bf16 %v86, %v80
    %v225 = vpack.c.bf16 %v93, %v87
    %v226 = vpack.c.bf16 %v94, %v88
    %v227 = vpack.c.bf16 %v95, %v89
    %v228 = vpack.c.bf16 %v96, %v90
    %v229 = vpack.c.bf16 %v97, %v91
    %v230 = vpack.c.bf16 %v98, %v92
    %v231 = vpack.c.bf16 %v105, %v99
    %v232 = vpack.c.bf16 %v106, %v100
    %v233 = vpack.c.bf16 %v107, %v101
    %v234 = vpack.c.bf16 %v108, %v102
    %v235 = vpack.c.bf16 %v109, %v103
    %v236 = vpack.c.bf16 %v110, %v104
    %v237 = vpack.c.bf16 %v117, %v111
    %v238 = vpack.c.bf16 %v118, %v112
    %v239 = vpack.c.bf16 %v119, %v113
    %v240 = vpack.c.bf16 %v120, %v114
    %v241 = vpack.c.bf16 %v121, %v115
    %v242 = vpack.c.bf16 %v122, %v116
    %v243 = vpack.c.bf16 %v129, %v123
    %v244 = vpack.c.bf16 %v130, %v124
    %v245 = vpack.c.bf16 %v131, %v125
    %v246 = vpack.c.bf16 %v132, %v126
    %v247 = vpack.c.bf16 %v133, %v127
    %v248 = vpack.c.bf16 %v134, %v128
    %v249 = vpack.c.bf16 %v141, %v135
    %v250 = vpack.c.bf16 %v142, %v136
    %v251 = vpack.c.bf16 %v143, %v137
    %v252 = vpack.c.bf16 %v144, %v138
    %v253 = vpack.c.bf16 %v145, %v139
    %v254 = vpack.c.bf16 %v146, %v140
    %v255 = vpack.c.bf16 %v153, %v147
    %v256 = vpack.c.bf16 %v154, %v148
    %v257 = vpack.c.bf16 %v155, %v149
    %v258 = vpack.c.bf16 %v156, %v150
    %v259 = vpack.c.bf16 %v157, %v151
    %v260 = vpack.c.bf16 %v158, %v152
    %v261 = vpack.c.bf16 %v165, %v159
    %v262 = vpack.c.bf16 %v166, %v160
    %v263 = vpack.c.bf16 %v167, %v161
    %v264 = vpack.c.bf16 %v168, %v162
    %v265 = vpack.c.bf16 %v169, %v163
    %v266 = vpack.c.bf16 %v170, %v164
    %v267 = vpack.c.bf16 %v177, %v171
    %v268 = vpack.c.bf16 %v178, %v172
    %v269 = vpack.c.bf16 %v179, %v173
    %v270 = vpack.c.bf16 %v180, %v174
    %v271 = vpack.c.bf16 %v181, %v175
    %v272 = vpack.c.bf16 %v182, %v176
    %v273 = vpack.c.bf16 %v189, %v183
    %v274 = vpack.c.bf16 %v190, %v184
    %v275 = vpack.c.bf16 %v191, %v185
    %v276 = vpack.c.bf16 %v192, %v186
    %v277 = vpack.c.bf16 %v193, %v187
    %v278 = vpack.c.bf16 %v194, %v188
    %v279 = vpack.c.bf16 %v201, %v195
    %v280 = vpack.c.bf16 %v202, %v196
    %v281 = vpack.c.bf16 %v203, %v197
    %v282 = vpack.c.bf16 %v204, %v198
    %v283 = vpack.c.bf16 %v205, %v199
    %v284 = vpack.c.bf16 %v206, %v200
    %v285 = vpack.c.bf16 %v207, %v207
    %v286 = vpack.c.bf16 %v208, %v208
    %v287 = vpack.c.bf16 %v209, %v209
    %v288 = vpack.c.bf16 %v210, %v210
    %v289 = vpack.c.bf16 %v211, %v211
    %v290 = vpack.c.bf16 %v212, %v212
    %v291 = vld [vmem:[#allocation5] sm:$0xff]
    %v292 = vld [vmem:[#allocation5 + $0x8] sm:$0xff]
    %v293 = vld [vmem:[#allocation5 + $0x10] sm:$0xff]
    %v294 = vld [vmem:[#allocation5 + $0x18] sm:$0xff]
    %v295 = vld [vmem:[#allocation5 + $0x20] sm:$0xff]
    %v296 = vld [vmem:[#allocation5 + $0x28] sm:$0xff]
    %v297 = vld [vmem:[#allocation5 + $0x30] sm:$0xff]
    %v298 = vld [vmem:[#allocation5 + $0x38] sm:$0xff]
    %v299 = vld [vmem:[#allocation5 + $0x40] sm:$0xff]
    %v300 = vld [vmem:[#allocation5 + $0x48] sm:$0xff]
    %v301 = vld [vmem:[#allocation5 + $0x50] sm:$0xff]
    %v302 = vld [vmem:[#allocation5 + $0x58] sm:$0xff]
    %v303 = vld [vmem:[#allocation5 + $0x60] sm:$0xff]
    %v304 = vld [vmem:[#allocation5 + $0x68] sm:$0xff]
    %v305 = vld [vmem:[#allocation5 + $0x70] sm:$0xff]
    %v306 = vld [vmem:[#allocation5 + $0x78] sm:$0xff]
    %v307 = vld [vmem:[#allocation5 + $0x80] sm:$0xff]
    %v308 = vld [vmem:[#allocation5 + $0x88] sm:$0xff]
    %v309 = vld [vmem:[#allocation5 + $0x90] sm:$0xff]
    %v310 = vld [vmem:[#allocation5 + $0x98] sm:$0xff]
    %v311 = vld [vmem:[#allocation5 + $0xa0] sm:$0xff]
    %v312 = vld [vmem:[#allocation5 + $0xa8] sm:$0xff]
    %v313 = vld [vmem:[#allocation5 + $0xb0] sm:$0xff]
    %v314 = vld [vmem:[#allocation5 + $0xb8] sm:$0xff]
    %v315 = vld [vmem:[#allocation5 + $0xc0] sm:$0xff]
    %v316 = vld [vmem:[#allocation5 + $0xc8] sm:$0xff]
    %v317 = vld [vmem:[#allocation5 + $0xd0] sm:$0xff]
    %v318 = vld [vmem:[#allocation5 + $0xd8] sm:$0xff]
    %v319 = vld [vmem:[#allocation5 + $0xe0] sm:$0xff]
    %v320 = vld [vmem:[#allocation5 + $0xe8] sm:$0xff]
    %v321 = vld [vmem:[#allocation5 + $0xf0] sm:$0xff]
    %v322 = vld [vmem:[#allocation5 + $0xf8] sm:$0xff]
    %v323 = vld [vmem:[#allocation5 + $0x100] sm:$0xff]
    %v324 = vld [vmem:[#allocation5 + $0x108] sm:$0xff]
    %v325 = vld [vmem:[#allocation5 + $0x110] sm:$0xff]
    %v326 = vld [vmem:[#allocation5 + $0x118] sm:$0xff]
    %v327 = vld [vmem:[#allocation5 + $0x120] sm:$0xff]
    %v328 = vld [vmem:[#allocation5 + $0x128] sm:$0xff]
    %v329 = vld [vmem:[#allocation5 + $0x130] sm:$0xff]
    %v330 = vld [vmem:[#allocation5 + $0x138] sm:$0xff]
    %v331 = vld [vmem:[#allocation5 + $0x140] sm:$0xff]
    %v332 = vld [vmem:[#allocation5 + $0x148] sm:$0xff]
    %v333 = vld [vmem:[#allocation5 + $0x150] sm:$0xff]
    %v334 = vld [vmem:[#allocation5 + $0x158] sm:$0xff]
    %v335 = vld [vmem:[#allocation5 + $0x160] sm:$0xff]
    %v336 = vld [vmem:[#allocation5 + $0x168] sm:$0xff]
    %v337 = vld [vmem:[#allocation5 + $0x170] sm:$0xff]
    %v338 = vld [vmem:[#allocation5 + $0x178] sm:$0xff]
    %v339 = vld [vmem:[#allocation5 + $0x180] sm:$0xff]
    %v340 = vld [vmem:[#allocation5 + $0x188] sm:$0xff]
    %v341 = vld [vmem:[#allocation5 + $0x190] sm:$0xff]
    %v342 = vld [vmem:[#allocation5 + $0x198] sm:$0xff]
    %v343 = vld [vmem:[#allocation5 + $0x1a0] sm:$0xff]
    %v344 = vld [vmem:[#allocation5 + $0x1a8] sm:$0xff]
    %v345 = vld [vmem:[#allocation5 + $0x1b0] sm:$0xff]
    %v346 = vld [vmem:[#allocation5 + $0x1b8] sm:$0xff]
    %v347 = vld [vmem:[#allocation5 + $0x1c0] sm:$0xff]
    %v348 = vld [vmem:[#allocation5 + $0x1c8] sm:$0xff]
    %v349 = vld [vmem:[#allocation5 + $0x1d0] sm:$0xff]
    %v350 = vld [vmem:[#allocation5 + $0x1d8] sm:$0xff]
    %v351 = vld [vmem:[#allocation5 + $0x1e0] sm:$0xff]
    %v352 = vld [vmem:[#allocation5 + $0x1e8] sm:$0xff]
    %v353 = vld [vmem:[#allocation5 + $0x1f0] sm:$0xff]
    %v354 = vld [vmem:[#allocation5 + $0x1f8] sm:$0xff]
    %v355 = vld [vmem:[#allocation5 + $0x200] sm:$0xff]
    %v356 = vld [vmem:[#allocation5 + $0x208] sm:$0xff]
    %v357 = vld [vmem:[#allocation5 + $0x210] sm:$0xff]
    %v358 = vld [vmem:[#allocation5 + $0x218] sm:$0xff]
    %v359 = vld [vmem:[#allocation5 + $0x220] sm:$0xff]
    %v360 = vld [vmem:[#allocation5 + $0x228] sm:$0xff]
    %v361 = vld [vmem:[#allocation5 + $0x230] sm:$0xff]
    %v362 = vld [vmem:[#allocation5 + $0x238] sm:$0xff]
    %v363 = vld [vmem:[#allocation5 + $0x240] sm:$0xff]
    %v364 = vld [vmem:[#allocation5 + $0x248] sm:$0xff]
    %v365 = vld [vmem:[#allocation5 + $0x250] sm:$0xff]
    %v366 = vld [vmem:[#allocation5 + $0x258] sm:$0xff]
    %v367 = vld [vmem:[#allocation5 + $0x260] sm:$0xff]
    %v368 = vld [vmem:[#allocation5 + $0x268] sm:$0xff]
    %v369 = vld [vmem:[#allocation5 + $0x270] sm:$0xff]
    %v370 = vld [vmem:[#allocation5 + $0x278] sm:$0xff]
    %v371 = vld [vmem:[#allocation5 + $0x280] sm:$0xff]
    %v372 = vld [vmem:[#allocation5 + $0x288] sm:$0xff]
    %v373 = vld [vmem:[#allocation5 + $0x290] sm:$0xff]
    %v374 = vld [vmem:[#allocation5 + $0x298] sm:$0xff]
    %v375 = vld [vmem:[#allocation5 + $0x2a0] sm:$0xff]
    %v376 = vld [vmem:[#allocation5 + $0x2a8] sm:$0xff]
    %v377 = vld [vmem:[#allocation5 + $0x2b0] sm:$0xff]
    %v378 = vld [vmem:[#allocation5 + $0x2b8] sm:$0xff]
    %v379 = vld [vmem:[#allocation5 + $0x2c0] sm:$0xff]
    %v380 = vld [vmem:[#allocation5 + $0x2c8] sm:$0xff]
    %v381 = vld [vmem:[#allocation5 + $0x2d0] sm:$0xff]
    %v382 = vld [vmem:[#allocation5 + $0x2d8] sm:$0xff]
    %v383 = vld [vmem:[#allocation5 + $0x2e0] sm:$0xff]
    %v384 = vld [vmem:[#allocation5 + $0x2e8] sm:$0xff]
    %v385 = vld [vmem:[#allocation5 + $0x2f0] sm:$0xff]
    %v386 = vld [vmem:[#allocation5 + $0x2f8] sm:$0xff]
    %v387 = vld [vmem:[#allocation5 + $0x300] sm:$0xff]
    %v388 = vld [vmem:[#allocation5 + $0x308] sm:$0xff]
    %v389 = vld [vmem:[#allocation5 + $0x310] sm:$0xff]
    %v390 = vld [vmem:[#allocation5 + $0x318] sm:$0xff]
    %v391 = vld [vmem:[#allocation5 + $0x320] sm:$0xff]
    %v392 = vld [vmem:[#allocation5 + $0x328] sm:$0xff]
    %v393 = vld [vmem:[#allocation5 + $0x330] sm:$0xff]
    %v394 = vld [vmem:[#allocation5 + $0x338] sm:$0xff]
    %v395 = vld [vmem:[#allocation5 + $0x340] sm:$0xff]
    %v396 = vld [vmem:[#allocation5 + $0x348] sm:$0xff]
    %v397 = vld [vmem:[#allocation5 + $0x350] sm:$0xff]
    %v398 = vld [vmem:[#allocation5 + $0x358] sm:$0xff]
    %v399 = vld [vmem:[#allocation5 + $0x360] sm:$0xff]
    %v400 = vld [vmem:[#allocation5 + $0x368] sm:$0xff]
    %v401 = vld [vmem:[#allocation5 + $0x370] sm:$0xff]
    %v402 = vld [vmem:[#allocation5 + $0x378] sm:$0xff]
    %v403 = vld [vmem:[#allocation5 + $0x380] sm:$0xff]
    %v404 = vld [vmem:[#allocation5 + $0x388] sm:$0xff]
    %v405 = vld [vmem:[#allocation5 + $0x390] sm:$0xff]
    %v406 = vld [vmem:[#allocation5 + $0x398] sm:$0xff]
    %v407 = vld [vmem:[#allocation5 + $0x3a0] sm:$0xff]
    %v408 = vld [vmem:[#allocation5 + $0x3a8] sm:$0xff]
    %v409 = vld [vmem:[#allocation5 + $0x3b0] sm:$0xff]
    %v410 = vld [vmem:[#allocation5 + $0x3b8] sm:$0xff]
    %v411 = vld [vmem:[#allocation5 + $0x3c0] sm:$0xff]
    %v412 = vld [vmem:[#allocation5 + $0x3c8] sm:$0xff]
    %v413 = vld [vmem:[#allocation5 + $0x3d0] sm:$0xff]
    %v414 = vld [vmem:[#allocation5 + $0x3d8] sm:$0xff]
    %v415 = vld [vmem:[#allocation5 + $0x3e0] sm:$0xff]
    %v416 = vld [vmem:[#allocation5 + $0x3e8] sm:$0xff]
    %v417 = vld [vmem:[#allocation5 + $0x3f0] sm:$0xff]
    %v418 = vld [vmem:[#allocation5 + $0x3f8] sm:$0xff]
    %v419 = vld [vmem:[#allocation5 + $0x400] sm:$0xff]
    %v420 = vld [vmem:[#allocation5 + $0x408] sm:$0xff]
    %v421 = vld [vmem:[#allocation5 + $0x410] sm:$0xff]
    %v422 = vld [vmem:[#allocation5 + $0x418] sm:$0xff]
    %v423 = vld [vmem:[#allocation5 + $0x420] sm:$0xff]
    %v424 = vld [vmem:[#allocation5 + $0x428] sm:$0xff]
    %v425 = vld [vmem:[#allocation5 + $0x430] sm:$0xff]
    %v426 = vld [vmem:[#allocation5 + $0x438] sm:$0xff]
    %v427 = vld [vmem:[#allocation5 + $0x440] sm:$0xff]
    %v428 = vld [vmem:[#allocation5 + $0x448] sm:$0xff]
    %v429 = vld [vmem:[#allocation5 + $0x450] sm:$0xff]
    %v430 = vld [vmem:[#allocation5 + $0x458] sm:$0xff]
    %v431 = vld [vmem:[#allocation5 + $0x460] sm:$0xff]
    %v432 = vld [vmem:[#allocation5 + $0x468] sm:$0xff]
    %v433 = vld [vmem:[#allocation5 + $0x470] sm:$0xff]
    %v434 = vld [vmem:[#allocation5 + $0x478] sm:$0xff]
    %v435 = vld [vmem:[#allocation5 + $0x480] sm:$0xff]
    %v436 = vld [vmem:[#allocation5 + $0x488] sm:$0xff]
    %v437 = vld [vmem:[#allocation5 + $0x490] sm:$0xff]
    %v438 = vld [vmem:[#allocation5 + $0x498] sm:$0xff]
    %v439 = vld [vmem:[#allocation5 + $0x4a0] sm:$0xff]
    %v440 = vld [vmem:[#allocation5 + $0x4a8] sm:$0xff]
    %v441 = vld [vmem:[#allocation5 + $0x4b0] sm:$0xff]
    %v442 = vld [vmem:[#allocation5 + $0x4b8] sm:$0xff]
    %v443 = vld [vmem:[#allocation5 + $0x4c0] sm:$0xff]
    %v444 = vld [vmem:[#allocation5 + $0x4c8] sm:$0xff]
    %v445 = vld [vmem:[#allocation5 + $0x4d0] sm:$0xff]
    %v446 = vld [vmem:[#allocation5 + $0x4d8] sm:$0xff]
    %v447 = vld [vmem:[#allocation5 + $0x4e0] sm:$0xff]
    %v448 = vld [vmem:[#allocation5 + $0x4e8] sm:$0xff]
    %v449 = vld [vmem:[#allocation5 + $0x4f0] sm:$0xff]
    %v450 = vld [vmem:[#allocation5 + $0x4f8] sm:$0xff]
    %v451 = vld [vmem:[#allocation5 + $0x500] sm:$0xff]
    %v452 = vld [vmem:[#allocation5 + $0x508] sm:$0xff]
    %v453 = vld [vmem:[#allocation5 + $0x510] sm:$0xff]
    %v454 = vld [vmem:[#allocation5 + $0x518] sm:$0xff]
    %v455 = vld [vmem:[#allocation5 + $0x520] sm:$0xff]
    %v456 = vld [vmem:[#allocation5 + $0x528] sm:$0xff]
    %v457 = vld [vmem:[#allocation5 + $0x530] sm:$0xff]
    %v458 = vld [vmem:[#allocation5 + $0x538] sm:$0xff]
    %v459 = vld [vmem:[#allocation5 + $0x540] sm:$0xff]
    %v460 = vld [vmem:[#allocation5 + $0x548] sm:$0xff]
    %v461 = vld [vmem:[#allocation5 + $0x550] sm:$0xff]
    %v462 = vld [vmem:[#allocation5 + $0x558] sm:$0xff]
    %v463 = vld [vmem:[#allocation5 + $0x560] sm:$0xff]
    %v464 = vld [vmem:[#allocation5 + $0x568] sm:$0xff]
    %v465 = vld [vmem:[#allocation5 + $0x570] sm:$0xff]
    %v466 = vld [vmem:[#allocation5 + $0x578] sm:$0xff]
    %v467 = vld [vmem:[#allocation5 + $0x580] sm:$0xff]
    %v468 = vld [vmem:[#allocation5 + $0x588] sm:$0xff]
    %v469 = vld [vmem:[#allocation5 + $0x590] sm:$0xff]
    %v470 = vld [vmem:[#allocation5 + $0x598] sm:$0xff]
    %v471 = vld [vmem:[#allocation5 + $0x5a0] sm:$0xff]
    %v472 = vld [vmem:[#allocation5 + $0x5a8] sm:$0xff]
    %v473 = vld [vmem:[#allocation5 + $0x5b0] sm:$0xff]
    %v474 = vld [vmem:[#allocation5 + $0x5b8] sm:$0xff]
    %v475 = vld [vmem:[#allocation5 + $0x5c0] sm:$0xff]
    %v476 = vld [vmem:[#allocation5 + $0x5c8] sm:$0xff]
    %v477 = vld [vmem:[#allocation5 + $0x5d0] sm:$0xff]
    %v478 = vld [vmem:[#allocation5 + $0x5d8] sm:$0xff]
    %v479 = vld [vmem:[#allocation5 + $0x5e0] sm:$0xff]
    %v480 = vld [vmem:[#allocation5 + $0x5e8] sm:$0xff]
    %v481 = vld [vmem:[#allocation5 + $0x5f0] sm:$0xff]
    %v482 = vld [vmem:[#allocation5 + $0x5f8] sm:$0xff]
    %v483 = vld [vmem:[%s2] sm:$0xf]
    %v485 = vlaneseq
    %v486 = vshrl.u32 %v485, 7
    %v487 = vsub.s32 0, %v486
    %v488 = vrot.slane %v483, %v487
    %v489 = vlaneseq
    %v490 = vshrl.u32 %v489, 7
    %v491 = vsub.s32 1, %v490
    %v492 = vrot.slane %v483, %v491
    %v493 = vlaneseq
    %v494 = vshrl.u32 %v493, 7
    %v495 = vsub.s32 2, %v494
    %v496 = vrot.slane %v483, %v495
    %v497 = vlaneseq
    %v498 = vshrl.u32 %v497, 7
    %v499 = vsub.s32 3, %v498
    %v500 = vrot.slane %v483, %v499
    %v697 = vunpack.c.l.b16 %v291
    %v698 = vunpack.c.h.b16 %v291
    %v699 = vunpack.c.l.b16 %v292
    %v700 = vunpack.c.h.b16 %v292
    %v701 = vunpack.c.l.b16 %v293
    %v702 = vunpack.c.h.b16 %v293
    %v703 = vunpack.c.l.b16 %v294
    %v704 = vunpack.c.h.b16 %v294
    %v705 = vunpack.c.l.b16 %v295
    %v706 = vunpack.c.h.b16 %v295
    %v707 = vunpack.c.l.b16 %v296
    %v708 = vunpack.c.h.b16 %v296
    %v709 = vunpack.c.l.b16 %v297
    %v710 = vunpack.c.h.b16 %v297
    %v711 = vunpack.c.l.b16 %v298
    %v712 = vunpack.c.h.b16 %v298
    %v713 = vunpack.c.l.b16 %v299
    %v714 = vunpack.c.h.b16 %v299
    %v715 = vunpack.c.l.b16 %v300
    %v716 = vunpack.c.h.b16 %v300
    %v717 = vunpack.c.l.b16 %v301
    %v718 = vunpack.c.h.b16 %v301
    %v719 = vunpack.c.l.b16 %v302
    %v720 = vunpack.c.h.b16 %v302
    %v721 = vunpack.c.l.b16 %v303
    %v722 = vunpack.c.h.b16 %v303
    %v723 = vunpack.c.l.b16 %v304
    %v724 = vunpack.c.h.b16 %v304
    %v725 = vunpack.c.l.b16 %v305
    %v726 = vunpack.c.h.b16 %v305
    %v727 = vunpack.c.l.b16 %v306
    %v728 = vunpack.c.h.b16 %v306
    %v729 = vunpack.c.l.b16 %v307
    %v730 = vunpack.c.h.b16 %v307
    %v731 = vunpack.c.l.b16 %v308
    %v732 = vunpack.c.h.b16 %v308
    %v733 = vunpack.c.l.b16 %v309
    %v734 = vunpack.c.h.b16 %v309
    %v735 = vunpack.c.l.b16 %v310
    %v736 = vunpack.c.h.b16 %v310
    %v737 = vunpack.c.l.b16 %v311
    %v738 = vunpack.c.h.b16 %v311
    %v739 = vunpack.c.l.b16 %v312
    %v740 = vunpack.c.h.b16 %v312
    %v741 = vunpack.c.l.b16 %v313
    %v742 = vunpack.c.h.b16 %v313
    %v743 = vunpack.c.l.b16 %v314
    %v744 = vunpack.c.h.b16 %v314
    %v745 = vunpack.c.l.b16 %v315
    %v746 = vunpack.c.h.b16 %v315
    %v747 = vunpack.c.l.b16 %v316
    %v748 = vunpack.c.h.b16 %v316
    %v749 = vunpack.c.l.b16 %v317
    %v750 = vunpack.c.h.b16 %v317
    %v751 = vunpack.c.l.b16 %v318
    %v752 = vunpack.c.h.b16 %v318
    %v753 = vunpack.c.l.b16 %v319
    %v754 = vunpack.c.h.b16 %v319
    %v755 = vunpack.c.l.b16 %v320
    %v756 = vunpack.c.h.b16 %v320
    %v757 = vunpack.c.l.b16 %v321
    %v758 = vunpack.c.h.b16 %v321
    %v759 = vunpack.c.l.b16 %v322
    %v760 = vunpack.c.h.b16 %v322
    %v761 = vunpack.c.l.b16 %v323
    %v762 = vunpack.c.h.b16 %v323
    %v763 = vunpack.c.l.b16 %v324
    %v764 = vunpack.c.h.b16 %v324
    %v765 = vunpack.c.l.b16 %v325
    %v766 = vunpack.c.h.b16 %v325
    %v767 = vunpack.c.l.b16 %v326
    %v768 = vunpack.c.h.b16 %v326
    %v769 = vunpack.c.l.b16 %v327
    %v770 = vunpack.c.h.b16 %v327
    %v771 = vunpack.c.l.b16 %v328
    %v772 = vunpack.c.h.b16 %v328
    %v773 = vunpack.c.l.b16 %v329
    %v774 = vunpack.c.h.b16 %v329
    %v775 = vunpack.c.l.b16 %v330
    %v776 = vunpack.c.h.b16 %v330
    %v777 = vunpack.c.l.b16 %v331
    %v778 = vunpack.c.h.b16 %v331
    %v779 = vunpack.c.l.b16 %v332
    %v780 = vunpack.c.h.b16 %v332
    %v781 = vunpack.c.l.b16 %v333
    %v782 = vunpack.c.h.b16 %v333
    %v783 = vunpack.c.l.b16 %v334
    %v784 = vunpack.c.h.b16 %v334
    %v785 = vunpack.c.l.b16 %v335
    %v786 = vunpack.c.h.b16 %v335
    %v787 = vunpack.c.l.b16 %v336
    %v788 = vunpack.c.h.b16 %v336
    %v789 = vunpack.c.l.b16 %v337
    %v790 = vunpack.c.h.b16 %v337
    %v791 = vunpack.c.l.b16 %v338
    %v792 = vunpack.c.h.b16 %v338
    %v793 = vunpack.c.l.b16 %v339
    %v794 = vunpack.c.h.b16 %v339
    %v795 = vunpack.c.l.b16 %v340
    %v796 = vunpack.c.h.b16 %v340
    %v797 = vunpack.c.l.b16 %v341
    %v798 = vunpack.c.h.b16 %v341
    %v799 = vunpack.c.l.b16 %v342
    %v800 = vunpack.c.h.b16 %v342
    %v801 = vunpack.c.l.b16 %v343
    %v802 = vunpack.c.h.b16 %v343
    %v803 = vunpack.c.l.b16 %v344
    %v804 = vunpack.c.h.b16 %v344
    %v805 = vunpack.c.l.b16 %v345
    %v806 = vunpack.c.h.b16 %v345
    %v807 = vunpack.c.l.b16 %v346
    %v808 = vunpack.c.h.b16 %v346
    %v809 = vunpack.c.l.b16 %v347
    %v810 = vunpack.c.h.b16 %v347
    %v811 = vunpack.c.l.b16 %v348
    %v812 = vunpack.c.h.b16 %v348
    %v813 = vunpack.c.l.b16 %v349
    %v814 = vunpack.c.h.b16 %v349
    %v815 = vunpack.c.l.b16 %v350
    %v816 = vunpack.c.h.b16 %v350
    %v817 = vunpack.c.l.b16 %v351
    %v818 = vunpack.c.h.b16 %v351
    %v819 = vunpack.c.l.b16 %v352
    %v820 = vunpack.c.h.b16 %v352
    %v821 = vunpack.c.l.b16 %v353
    %v822 = vunpack.c.h.b16 %v353
    %v823 = vunpack.c.l.b16 %v354
    %v824 = vunpack.c.h.b16 %v354
    %v825 = vunpack.c.l.b16 %v355
    %v826 = vunpack.c.h.b16 %v355
    %v827 = vunpack.c.l.b16 %v356
    %v828 = vunpack.c.h.b16 %v356
    %v829 = vunpack.c.l.b16 %v357
    %v830 = vunpack.c.h.b16 %v357
    %v831 = vunpack.c.l.b16 %v358
    %v832 = vunpack.c.h.b16 %v358
    %v833 = vunpack.c.l.b16 %v359
    %v834 = vunpack.c.h.b16 %v359
    %v835 = vunpack.c.l.b16 %v360
    %v836 = vunpack.c.h.b16 %v360
    %v837 = vunpack.c.l.b16 %v361
    %v838 = vunpack.c.h.b16 %v361
    %v839 = vunpack.c.l.b16 %v362
    %v840 = vunpack.c.h.b16 %v362
    %v841 = vunpack.c.l.b16 %v363
    %v842 = vunpack.c.h.b16 %v363
    %v843 = vunpack.c.l.b16 %v364
    %v844 = vunpack.c.h.b16 %v364
    %v845 = vunpack.c.l.b16 %v365
    %v846 = vunpack.c.h.b16 %v365
    %v847 = vunpack.c.l.b16 %v366
    %v848 = vunpack.c.h.b16 %v366
    %v849 = vunpack.c.l.b16 %v367
    %v850 = vunpack.c.h.b16 %v367
    %v851 = vunpack.c.l.b16 %v368
    %v852 = vunpack.c.h.b16 %v368
    %v853 = vunpack.c.l.b16 %v369
    %v854 = vunpack.c.h.b16 %v369
    %v855 = vunpack.c.l.b16 %v370
    %v856 = vunpack.c.h.b16 %v370
    %v857 = vunpack.c.l.b16 %v371
    %v858 = vunpack.c.h.b16 %v371
    %v859 = vunpack.c.l.b16 %v372
    %v860 = vunpack.c.h.b16 %v372
    %v861 = vunpack.c.l.b16 %v373
    %v862 = vunpack.c.h.b16 %v373
    %v863 = vunpack.c.l.b16 %v374
    %v864 = vunpack.c.h.b16 %v374
    %v865 = vunpack.c.l.b16 %v375
    %v866 = vunpack.c.h.b16 %v375
    %v867 = vunpack.c.l.b16 %v376
    %v868 = vunpack.c.h.b16 %v376
    %v869 = vunpack.c.l.b16 %v377
    %v870 = vunpack.c.h.b16 %v377
    %v871 = vunpack.c.l.b16 %v378
    %v872 = vunpack.c.h.b16 %v378
    %v873 = vunpack.c.l.b16 %v379
    %v874 = vunpack.c.h.b16 %v379
    %v875 = vunpack.c.l.b16 %v380
    %v876 = vunpack.c.h.b16 %v380
    %v877 = vunpack.c.l.b16 %v381
    %v878 = vunpack.c.h.b16 %v381
    %v879 = vunpack.c.l.b16 %v382
    %v880 = vunpack.c.h.b16 %v382
    %v881 = vunpack.c.l.b16 %v383
    %v882 = vunpack.c.h.b16 %v383
    %v883 = vunpack.c.l.b16 %v384
    %v884 = vunpack.c.h.b16 %v384
    %v885 = vunpack.c.l.b16 %v385
    %v886 = vunpack.c.h.b16 %v385
    %v887 = vunpack.c.l.b16 %v386
    %v888 = vunpack.c.h.b16 %v386
    %v889 = vunpack.c.l.b16 %v387
    %v890 = vunpack.c.h.b16 %v387
    %v891 = vunpack.c.l.b16 %v388
    %v892 = vunpack.c.h.b16 %v388
    %v893 = vunpack.c.l.b16 %v389
    %v894 = vunpack.c.h.b16 %v389
    %v895 = vunpack.c.l.b16 %v390
    %v896 = vunpack.c.h.b16 %v390
    %v897 = vunpack.c.l.b16 %v391
    %v898 = vunpack.c.h.b16 %v391
    %v899 = vunpack.c.l.b16 %v392
    %v900 = vunpack.c.h.b16 %v392
    %v901 = vunpack.c.l.b16 %v393
    %v902 = vunpack.c.h.b16 %v393
    %v903 = vunpack.c.l.b16 %v394
    %v904 = vunpack.c.h.b16 %v394
    %v905 = vunpack.c.l.b16 %v395
    %v906 = vunpack.c.h.b16 %v395
    %v907 = vunpack.c.l.b16 %v396
    %v908 = vunpack.c.h.b16 %v396
    %v909 = vunpack.c.l.b16 %v397
    %v910 = vunpack.c.h.b16 %v397
    %v911 = vunpack.c.l.b16 %v398
    %v912 = vunpack.c.h.b16 %v398
    %v913 = vunpack.c.l.b16 %v399
    %v914 = vunpack.c.h.b16 %v399
    %v915 = vunpack.c.l.b16 %v400
    %v916 = vunpack.c.h.b16 %v400
    %v917 = vunpack.c.l.b16 %v401
    %v918 = vunpack.c.h.b16 %v401
    %v919 = vunpack.c.l.b16 %v402
    %v920 = vunpack.c.h.b16 %v402
    %v921 = vunpack.c.l.b16 %v403
    %v922 = vunpack.c.h.b16 %v403
    %v923 = vunpack.c.l.b16 %v404
    %v924 = vunpack.c.h.b16 %v404
    %v925 = vunpack.c.l.b16 %v405
    %v926 = vunpack.c.h.b16 %v405
    %v927 = vunpack.c.l.b16 %v406
    %v928 = vunpack.c.h.b16 %v406
    %v929 = vunpack.c.l.b16 %v407
    %v930 = vunpack.c.h.b16 %v407
    %v931 = vunpack.c.l.b16 %v408
    %v932 = vunpack.c.h.b16 %v408
    %v933 = vunpack.c.l.b16 %v409
    %v934 = vunpack.c.h.b16 %v409
    %v935 = vunpack.c.l.b16 %v410
    %v936 = vunpack.c.h.b16 %v410
    %v937 = vunpack.c.l.b16 %v411
    %v938 = vunpack.c.h.b16 %v411
    %v939 = vunpack.c.l.b16 %v412
    %v940 = vunpack.c.h.b16 %v412
    %v941 = vunpack.c.l.b16 %v413
    %v942 = vunpack.c.h.b16 %v413
    %v943 = vunpack.c.l.b16 %v414
    %v944 = vunpack.c.h.b16 %v414
    %v945 = vunpack.c.l.b16 %v415
    %v946 = vunpack.c.h.b16 %v415
    %v947 = vunpack.c.l.b16 %v416
    %v948 = vunpack.c.h.b16 %v416
    %v949 = vunpack.c.l.b16 %v417
    %v950 = vunpack.c.h.b16 %v417
    %v951 = vunpack.c.l.b16 %v418
    %v952 = vunpack.c.h.b16 %v418
    %v953 = vunpack.c.l.b16 %v419
    %v954 = vunpack.c.h.b16 %v419
    %v955 = vunpack.c.l.b16 %v420
    %v956 = vunpack.c.h.b16 %v420
    %v957 = vunpack.c.l.b16 %v421
    %v958 = vunpack.c.h.b16 %v421
    %v959 = vunpack.c.l.b16 %v422
    %v960 = vunpack.c.h.b16 %v422
    %v961 = vunpack.c.l.b16 %v423
    %v962 = vunpack.c.h.b16 %v423
    %v963 = vunpack.c.l.b16 %v424
    %v964 = vunpack.c.h.b16 %v424
    %v965 = vunpack.c.l.b16 %v425
    %v966 = vunpack.c.h.b16 %v425
    %v967 = vunpack.c.l.b16 %v426
    %v968 = vunpack.c.h.b16 %v426
    %v969 = vunpack.c.l.b16 %v427
    %v970 = vunpack.c.h.b16 %v427
    %v971 = vunpack.c.l.b16 %v428
    %v972 = vunpack.c.h.b16 %v428
    %v973 = vunpack.c.l.b16 %v429
    %v974 = vunpack.c.h.b16 %v429
    %v975 = vunpack.c.l.b16 %v430
    %v976 = vunpack.c.h.b16 %v430
    %v977 = vunpack.c.l.b16 %v431
    %v978 = vunpack.c.h.b16 %v431
    %v979 = vunpack.c.l.b16 %v432
    %v980 = vunpack.c.h.b16 %v432
    %v981 = vunpack.c.l.b16 %v433
    %v982 = vunpack.c.h.b16 %v433
    %v983 = vunpack.c.l.b16 %v434
    %v984 = vunpack.c.h.b16 %v434
    %v985 = vunpack.c.l.b16 %v435
    %v986 = vunpack.c.h.b16 %v435
    %v987 = vunpack.c.l.b16 %v436
    %v988 = vunpack.c.h.b16 %v436
    %v989 = vunpack.c.l.b16 %v437
    %v990 = vunpack.c.h.b16 %v437
    %v991 = vunpack.c.l.b16 %v438
    %v992 = vunpack.c.h.b16 %v438
    %v993 = vunpack.c.l.b16 %v439
    %v994 = vunpack.c.h.b16 %v439
    %v995 = vunpack.c.l.b16 %v440
    %v996 = vunpack.c.h.b16 %v440
    %v997 = vunpack.c.l.b16 %v441
    %v998 = vunpack.c.h.b16 %v441
    %v999 = vunpack.c.l.b16 %v442
    %v1000 = vunpack.c.h.b16 %v442
    %v1001 = vunpack.c.l.b16 %v443
    %v1002 = vunpack.c.h.b16 %v443
    %v1003 = vunpack.c.l.b16 %v444
    %v1004 = vunpack.c.h.b16 %v444
    %v1005 = vunpack.c.l.b16 %v445
    %v1006 = vunpack.c.h.b16 %v445
    %v1007 = vunpack.c.l.b16 %v446
    %v1008 = vunpack.c.h.b16 %v446
    %v1009 = vunpack.c.l.b16 %v447
    %v1010 = vunpack.c.h.b16 %v447
    %v1011 = vunpack.c.l.b16 %v448
    %v1012 = vunpack.c.h.b16 %v448
    %v1013 = vunpack.c.l.b16 %v449
    %v1014 = vunpack.c.h.b16 %v449
    %v1015 = vunpack.c.l.b16 %v450
    %v1016 = vunpack.c.h.b16 %v450
    %v1017 = vunpack.c.l.b16 %v451
    %v1018 = vunpack.c.h.b16 %v451
    %v1019 = vunpack.c.l.b16 %v452
    %v1020 = vunpack.c.h.b16 %v452
    %v1021 = vunpack.c.l.b16 %v453
    %v1022 = vunpack.c.h.b16 %v453
    %v1023 = vunpack.c.l.b16 %v454
    %v1024 = vunpack.c.h.b16 %v454
    %v1025 = vunpack.c.l.b16 %v455
    %v1026 = vunpack.c.h.b16 %v455
    %v1027 = vunpack.c.l.b16 %v456
    %v1028 = vunpack.c.h.b16 %v456
    %v1029 = vunpack.c.l.b16 %v457
    %v1030 = vunpack.c.h.b16 %v457
    %v1031 = vunpack.c.l.b16 %v458
    %v1032 = vunpack.c.h.b16 %v458
    %v1033 = vunpack.c.l.b16 %v459
    %v1034 = vunpack.c.h.b16 %v459
    %v1035 = vunpack.c.l.b16 %v460
    %v1036 = vunpack.c.h.b16 %v460
    %v1037 = vunpack.c.l.b16 %v461
    %v1038 = vunpack.c.h.b16 %v461
    %v1039 = vunpack.c.l.b16 %v462
    %v1040 = vunpack.c.h.b16 %v462
    %v1041 = vunpack.c.l.b16 %v463
    %v1042 = vunpack.c.h.b16 %v463
    %v1043 = vunpack.c.l.b16 %v464
    %v1044 = vunpack.c.h.b16 %v464
    %v1045 = vunpack.c.l.b16 %v465
    %v1046 = vunpack.c.h.b16 %v465
    %v1047 = vunpack.c.l.b16 %v466
    %v1048 = vunpack.c.h.b16 %v466
    %v1049 = vunpack.c.l.b16 %v467
    %v1050 = vunpack.c.h.b16 %v467
    %v1051 = vunpack.c.l.b16 %v468
    %v1052 = vunpack.c.h.b16 %v468
    %v1053 = vunpack.c.l.b16 %v469
    %v1054 = vunpack.c.h.b16 %v469
    %v1055 = vunpack.c.l.b16 %v470
    %v1056 = vunpack.c.h.b16 %v470
    %v1057 = vunpack.c.l.b16 %v471
    %v1058 = vunpack.c.h.b16 %v471
    %v1059 = vunpack.c.l.b16 %v472
    %v1060 = vunpack.c.h.b16 %v472
    %v1061 = vunpack.c.l.b16 %v473
    %v1062 = vunpack.c.h.b16 %v473
    %v1063 = vunpack.c.l.b16 %v474
    %v1064 = vunpack.c.h.b16 %v474
    %v1065 = vunpack.c.l.b16 %v475
    %v1066 = vunpack.c.h.b16 %v475
    %v1067 = vunpack.c.l.b16 %v476
    %v1068 = vunpack.c.h.b16 %v476
    %v1069 = vunpack.c.l.b16 %v477
    %v1070 = vunpack.c.h.b16 %v477
    %v1071 = vunpack.c.l.b16 %v478
    %v1072 = vunpack.c.h.b16 %v478
    %v1073 = vunpack.c.l.b16 %v479
    %v1074 = vunpack.c.h.b16 %v479
    %v1075 = vunpack.c.l.b16 %v480
    %v1076 = vunpack.c.h.b16 %v480
    %v1077 = vunpack.c.l.b16 %v481
    %v1078 = vunpack.c.h.b16 %v481
    %v1079 = vunpack.c.l.b16 %v482
    %v1080 = vunpack.c.h.b16 %v482
    %v1081 = vpack.c.b16 %v701, %v697
    %v1082 = vpack.c.b16 %v702, %v698
    %v1083 = vpack.c.b16 %v703, %v699
    %v1084 = vpack.c.b16 %v704, %v700
    %v1085 = vpack.c.b16 %v709, %v705
    %v1086 = vpack.c.b16 %v710, %v706
    %v1087 = vpack.c.b16 %v711, %v707
    %v1088 = vpack.c.b16 %v712, %v708
    %v1089 = vpack.c.b16 %v717, %v713
    %v1090 = vpack.c.b16 %v718, %v714
    %v1091 = vpack.c.b16 %v719, %v715
    %v1092 = vpack.c.b16 %v720, %v716
    %v1093 = vpack.c.b16 %v725, %v721
    %v1094 = vpack.c.b16 %v726, %v722
    %v1095 = vpack.c.b16 %v727, %v723
    %v1096 = vpack.c.b16 %v728, %v724
    %v1097 = vpack.c.b16 %v733, %v729
    %v1098 = vpack.c.b16 %v734, %v730
    %v1099 = vpack.c.b16 %v735, %v731
    %v1100 = vpack.c.b16 %v736, %v732
    %v1101 = vpack.c.b16 %v741, %v737
    %v1102 = vpack.c.b16 %v742, %v738
    %v1103 = vpack.c.b16 %v743, %v739
    %v1104 = vpack.c.b16 %v744, %v740
    %v1105 = vpack.c.b16 %v749, %v745
    %v1106 = vpack.c.b16 %v750, %v746
    %v1107 = vpack.c.b16 %v751, %v747
    %v1108 = vpack.c.b16 %v752, %v748
    %v1109 = vpack.c.b16 %v757, %v753
    %v1110 = vpack.c.b16 %v758, %v754
    %v1111 = vpack.c.b16 %v759, %v755
    %v1112 = vpack.c.b16 %v760, %v756
    %v1113 = vpack.c.b16 %v765, %v761
    %v1114 = vpack.c.b16 %v766, %v762
    %v1115 = vpack.c.b16 %v767, %v763
    %v1116 = vpack.c.b16 %v768, %v764
    %v1117 = vpack.c.b16 %v773, %v769
    %v1118 = vpack.c.b16 %v774, %v770
    %v1119 = vpack.c.b16 %v775, %v771
    %v1120 = vpack.c.b16 %v776, %v772
    %v1121 = vpack.c.b16 %v781, %v777
    %v1122 = vpack.c.b16 %v782, %v778
    %v1123 = vpack.c.b16 %v783, %v779
    %v1124 = vpack.c.b16 %v784, %v780
    %v1125 = vpack.c.b16 %v789, %v785
    %v1126 = vpack.c.b16 %v790, %v786
    %v1127 = vpack.c.b16 %v791, %v787
    %v1128 = vpack.c.b16 %v792, %v788
    %v1129 = vpack.c.b16 %v797, %v793
    %v1130 = vpack.c.b16 %v798, %v794
    %v1131 = vpack.c.b16 %v799, %v795
    %v1132 = vpack.c.b16 %v800, %v796
    %v1133 = vpack.c.b16 %v805, %v801
    %v1134 = vpack.c.b16 %v806, %v802
    %v1135 = vpack.c.b16 %v807, %v803
    %v1136 = vpack.c.b16 %v808, %v804
    %v1137 = vpack.c.b16 %v813, %v809
    %v1138 = vpack.c.b16 %v814, %v810
    %v1139 = vpack.c.b16 %v815, %v811
    %v1140 = vpack.c.b16 %v816, %v812
    %v1141 = vpack.c.b16 %v821, %v817
    %v1142 = vpack.c.b16 %v822, %v818
    %v1143 = vpack.c.b16 %v823, %v819
    %v1144 = vpack.c.b16 %v824, %v820
    %v1145 = vpack.c.b16 %v829, %v825
    %v1146 = vpack.c.b16 %v830, %v826
    %v1147 = vpack.c.b16 %v831, %v827
    %v1148 = vpack.c.b16 %v832, %v828
    %v1149 = vpack.c.b16 %v837, %v833
    %v1150 = vpack.c.b16 %v838, %v834
    %v1151 = vpack.c.b16 %v839, %v835
    %v1152 = vpack.c.b16 %v840, %v836
    %v1153 = vpack.c.b16 %v845, %v841
    %v1154 = vpack.c.b16 %v846, %v842
    %v1155 = vpack.c.b16 %v847, %v843
    %v1156 = vpack.c.b16 %v848, %v844
    %v1157 = vpack.c.b16 %v853, %v849
    %v1158 = vpack.c.b16 %v854, %v850
    %v1159 = vpack.c.b16 %v855, %v851
    %v1160 = vpack.c.b16 %v856, %v852
    %v1161 = vpack.c.b16 %v861, %v857
    %v1162 = vpack.c.b16 %v862, %v858
    %v1163 = vpack.c.b16 %v863, %v859
    %v1164 = vpack.c.b16 %v864, %v860
    %v1165 = vpack.c.b16 %v869, %v865
    %v1166 = vpack.c.b16 %v870, %v866
    %v1167 = vpack.c.b16 %v871, %v867
    %v1168 = vpack.c.b16 %v872, %v868
    %v1169 = vpack.c.b16 %v877, %v873
    %v1170 = vpack.c.b16 %v878, %v874
    %v1171 = vpack.c.b16 %v879, %v875
    %v1172 = vpack.c.b16 %v880, %v876
    %v1173 = vpack.c.b16 %v885, %v881
    %v1174 = vpack.c.b16 %v886, %v882
    %v1175 = vpack.c.b16 %v887, %v883
    %v1176 = vpack.c.b16 %v888, %v884
    %v1177 = vpack.c.b16 %v893, %v889
    %v1178 = vpack.c.b16 %v894, %v890
    %v1179 = vpack.c.b16 %v895, %v891
    %v1180 = vpack.c.b16 %v896, %v892
    %v1181 = vpack.c.b16 %v901, %v897
    %v1182 = vpack.c.b16 %v902, %v898
    %v1183 = vpack.c.b16 %v903, %v899
    %v1184 = vpack.c.b16 %v904, %v900
    %v1185 = vpack.c.b16 %v909, %v905
    %v1186 = vpack.c.b16 %v910, %v906
    %v1187 = vpack.c.b16 %v911, %v907
    %v1188 = vpack.c.b16 %v912, %v908
    %v1189 = vpack.c.b16 %v917, %v913
    %v1190 = vpack.c.b16 %v918, %v914
    %v1191 = vpack.c.b16 %v919, %v915
    %v1192 = vpack.c.b16 %v920, %v916
    %v1193 = vpack.c.b16 %v925, %v921
    %v1194 = vpack.c.b16 %v926, %v922
    %v1195 = vpack.c.b16 %v927, %v923
    %v1196 = vpack.c.b16 %v928, %v924
    %v1197 = vpack.c.b16 %v933, %v929
    %v1198 = vpack.c.b16 %v934, %v930
    %v1199 = vpack.c.b16 %v935, %v931
    %v1200 = vpack.c.b16 %v936, %v932
    %v1201 = vpack.c.b16 %v941, %v937
    %v1202 = vpack.c.b16 %v942, %v938
    %v1203 = vpack.c.b16 %v943, %v939
    %v1204 = vpack.c.b16 %v944, %v940
    %v1205 = vpack.c.b16 %v949, %v945
    %v1206 = vpack.c.b16 %v950, %v946
    %v1207 = vpack.c.b16 %v951, %v947
    %v1208 = vpack.c.b16 %v952, %v948
    %v1209 = vpack.c.b16 %v957, %v953
    %v1210 = vpack.c.b16 %v958, %v954
    %v1211 = vpack.c.b16 %v959, %v955
    %v1212 = vpack.c.b16 %v960, %v956
    %v1213 = vpack.c.b16 %v965, %v961
    %v1214 = vpack.c.b16 %v966, %v962
    %v1215 = vpack.c.b16 %v967, %v963
    %v1216 = vpack.c.b16 %v968, %v964
    %v1217 = vpack.c.b16 %v973, %v969
    %v1218 = vpack.c.b16 %v974, %v970
    %v1219 = vpack.c.b16 %v975, %v971
    %v1220 = vpack.c.b16 %v976, %v972
    %v1221 = vpack.c.b16 %v981, %v977
    %v1222 = vpack.c.b16 %v982, %v978
    %v1223 = vpack.c.b16 %v983, %v979
    %v1224 = vpack.c.b16 %v984, %v980
    %v1225 = vpack.c.b16 %v989, %v985
    %v1226 = vpack.c.b16 %v990, %v986
    %v1227 = vpack.c.b16 %v991, %v987
    %v1228 = vpack.c.b16 %v992, %v988
    %v1229 = vpack.c.b16 %v997, %v993
    %v1230 = vpack.c.b16 %v998, %v994
    %v1231 = vpack.c.b16 %v999, %v995
    %v1232 = vpack.c.b16 %v1000, %v996
    %v1233 = vpack.c.b16 %v1005, %v1001
    %v1234 = vpack.c.b16 %v1006, %v1002
    %v1235 = vpack.c.b16 %v1007, %v1003
    %v1236 = vpack.c.b16 %v1008, %v1004
    %v1237 = vpack.c.b16 %v1013, %v1009
    %v1238 = vpack.c.b16 %v1014, %v1010
    %v1239 = vpack.c.b16 %v1015, %v1011
    %v1240 = vpack.c.b16 %v1016, %v1012
    %v1241 = vpack.c.b16 %v1021, %v1017
    %v1242 = vpack.c.b16 %v1022, %v1018
    %v1243 = vpack.c.b16 %v1023, %v1019
    %v1244 = vpack.c.b16 %v1024, %v1020
    %v1245 = vpack.c.b16 %v1029, %v1025
    %v1246 = vpack.c.b16 %v1030, %v1026
    %v1247 = vpack.c.b16 %v1031, %v1027
    %v1248 = vpack.c.b16 %v1032, %v1028
    %v1249 = vpack.c.b16 %v1037, %v1033
    %v1250 = vpack.c.b16 %v1038, %v1034
    %v1251 = vpack.c.b16 %v1039, %v1035
    %v1252 = vpack.c.b16 %v1040, %v1036
    %v1253 = vpack.c.b16 %v1045, %v1041
    %v1254 = vpack.c.b16 %v1046, %v1042
    %v1255 = vpack.c.b16 %v1047, %v1043
    %v1256 = vpack.c.b16 %v1048, %v1044
    %v1257 = vpack.c.b16 %v1053, %v1049
    %v1258 = vpack.c.b16 %v1054, %v1050
    %v1259 = vpack.c.b16 %v1055, %v1051
    %v1260 = vpack.c.b16 %v1056, %v1052
    %v1261 = vpack.c.b16 %v1061, %v1057
    %v1262 = vpack.c.b16 %v1062, %v1058
    %v1263 = vpack.c.b16 %v1063, %v1059
    %v1264 = vpack.c.b16 %v1064, %v1060
    %v1265 = vpack.c.b16 %v1069, %v1065
    %v1266 = vpack.c.b16 %v1070, %v1066
    %v1267 = vpack.c.b16 %v1071, %v1067
    %v1268 = vpack.c.b16 %v1072, %v1068
    %v1269 = vpack.c.b16 %v1077, %v1073
    %v1270 = vpack.c.b16 %v1078, %v1074
    %v1271 = vpack.c.b16 %v1079, %v1075
    %v1272 = vpack.c.b16 %v1080, %v1076
    %1465 = vmatprep.subr.bf16.mxu0 %v1082
    %1466 = vmatpush1.bf16.msra.mxu0 %v1081
    %1467 = vmatprep.subr.bf16.mxu0 %v1086
    %1468 = vmatpush1.bf16.msra.mxu0 %v1085
    %1469 = vmatprep.subr.bf16.mxu0 %v1090
    %1470 = vmatpush1.bf16.msra.mxu0 %v1089
    %1471 = vmatprep.subr.bf16.mxu0 %v1094
    %1472 = vmatpush1.bf16.msra.mxu0 %v1093
    %1473 = vmatprep.subr.bf16.mxu0 %v1098
    %1474 = vmatpush1.bf16.msra.mxu0 %v1097
    %1475 = vmatprep.subr.bf16.mxu0 %v1102
    %1476 = vmatpush1.bf16.msra.mxu0 %v1101
    %1477 = vmatprep.subr.bf16.mxu0 %v1106
    %1478 = vmatpush1.bf16.msra.mxu0 %v1105
    %1479 = vmatprep.subr.bf16.mxu0 %v1110
    %1480 = vmatpush1.bf16.msra.mxu0 %v1109
    %1481 = vmatprep.subr.bf16.mxu0 %v1114
    %1482 = vmatpush1.bf16.msra.mxu0 %v1113
    %1483 = vmatprep.subr.bf16.mxu0 %v1118
    %1484 = vmatpush1.bf16.msra.mxu0 %v1117
    %1485 = vmatprep.subr.bf16.mxu0 %v1122
    %1486 = vmatpush1.bf16.msra.mxu0 %v1121
    %1487 = vmatprep.subr.bf16.mxu0 %v1126
    %1488 = vmatpush1.bf16.msra.mxu0 %v1125
    %1489 = vmatprep.subr.bf16.mxu0 %v1130
    %1490 = vmatpush1.bf16.msra.mxu0 %v1129
    %1491 = vmatprep.subr.bf16.mxu0 %v1134
    %1492 = vmatpush1.bf16.msra.mxu0 %v1133
    %1493 = vmatprep.subr.bf16.mxu0 %v1138
    %1494 = vmatpush1.bf16.msra.mxu0 %v1137
    %1495 = vmatprep.subr.bf16.mxu0 %v1142
    %1496 = vmatpush1.bf16.msra.mxu0 %v1141
    %1497 = vmatprep.mubr.bf16.mxu0 %v214
    %1498 = vmatmul.mubr.bf16.gmra.mrb[0].mxu0 %v213
    %v1499 = vpop.f32.mrb[0].mxu0
    %v1500 = vadd.f32 %v488, %v1499
    %v1501 = vpop.f32.mrb[0].mxu0
    %v1502 = vadd.f32 %v492, %v1501
    %v1503 = vpop.f32.mrb[0].mxu0
    %v1504 = vadd.f32 %v488, %v1503
    %v1505 = vpop.f32.mrb[0].mxu0
    %v1506 = vadd.f32 %v492, %v1505
    %1507 = vmatprep.mubr.bf16.mxu0 %v220
    %1508 = vmatmul.mubr.bf16.gmra.mrb[0].mxu0 %v219
    %v1509 = vpop.f32.mrb[0].mxu0
    %v1510 = vadd.f32 %v488, %v1509
    %v1511 = vpop.f32.mrb[0].mxu0
    %v1512 = vadd.f32 %v492, %v1511
    %v1513 = vpop.f32.mrb[0].mxu0
    %v1514 = vadd.f32 %v488, %v1513
    %v1515 = vpop.f32.mrb[0].mxu0
    %v1516 = vadd.f32 %v492, %v1515
    %1517 = vmatprep.mubr.bf16.mxu0 %v226
    %1518 = vmatmul.mubr.bf16.gmra.mrb[0].mxu0 %v225
    %v1519 = vpop.f32.mrb[0].mxu0
    %v1520 = vadd.f32 %v488, %v1519
    %v1521 = vpop.f32.mrb[0].mxu0
    %v1522 = vadd.f32 %v492, %v1521
    %v1523 = vpop.f32.mrb[0].mxu0
    %v1524 = vadd.f32 %v488, %v1523
    %v1525 = vpop.f32.mrb[0].mxu0
    %v1526 = vadd.f32 %v492, %v1525
    %1527 = vmatprep.mubr.bf16.mxu0 %v232
    %1528 = vmatmul.mubr.bf16.gmra.mrb[0].mxu0 %v231
    %v1529 = vpop.f32.mrb[0].mxu0
    %v1530 = vadd.f32 %v488, %v1529
    %v1531 = vpop.f32.mrb[0].mxu0
    %v1532 = vadd.f32 %v492, %v1531
    %v1533 = vpop.f32.mrb[0].mxu0
    %v1534 = vadd.f32 %v488, %v1533
    %v1535 = vpop.f32.mrb[0].mxu0
    %v1536 = vadd.f32 %v492, %v1535
    %1537 = vmatprep.mubr.bf16.mxu0 %v238
    %1538 = vmatmul.mubr.bf16.gmra.mrb[0].mxu0 %v237
    %v1539 = vpop.f32.mrb[0].mxu0
    %v1540 = vadd.f32 %v488, %v1539
    %v1541 = vpop.f32.mrb[0].mxu0
    %v1542 = vadd.f32 %v492, %v1541
    %v1543 = vpop.f32.mrb[0].mxu0
    %v1544 = vadd.f32 %v488, %v1543
    %v1545 = vpop.f32.mrb[0].mxu0
    %v1546 = vadd.f32 %v492, %v1545
    %1547 = vmatprep.mubr.bf16.mxu0 %v244
    %1548 = vmatmul.mubr.bf16.gmra.mrb[0].mxu0 %v243
    %v1549 = vpop.f32.mrb[0].mxu0
    %v1550 = vadd.f32 %v488, %v1549
    %v1551 = vpop.f32.mrb[0].mxu0
    %v1552 = vadd.f32 %v492, %v1551
    %v1553 = vpop.f32.mrb[0].mxu0
    %v1554 = vadd.f32 %v488, %v1553
    %v1555 = vpop.f32.mrb[0].mxu0
    %v1556 = vadd.f32 %v492, %v1555
    %1557 = vmatprep.mubr.bf16.mxu0 %v250
    %1558 = vmatmul.mubr.bf16.gmra.mrb[0].mxu0 %v249
    %v1559 = vpop.f32.mrb[0].mxu0
    %v1560 = vadd.f32 %v488, %v1559
    %v1561 = vpop.f32.mrb[0].mxu0
    %v1562 = vadd.f32 %v492, %v1561
    %v1563 = vpop.f32.mrb[0].mxu0
    %v1564 = vadd.f32 %v488, %v1563
    %v1565 = vpop.f32.mrb[0].mxu0
    %v1566 = vadd.f32 %v492, %v1565
    %1567 = vmatprep.mubr.bf16.mxu0 %v256
    %1568 = vmatmul.mubr.bf16.gmra.mrb[0].mxu0 %v255
    %v1569 = vpop.f32.mrb[0].mxu0
    %v1570 = vadd.f32 %v488, %v1569
    %v1571 = vpop.f32.mrb[0].mxu0
    %v1572 = vadd.f32 %v492, %v1571
    %v1573 = vpop.f32.mrb[0].mxu0
    %v1574 = vadd.f32 %v488, %v1573
    %v1575 = vpop.f32.mrb[0].mxu0
    %v1576 = vadd.f32 %v492, %v1575
    %1577 = vmatprep.mubr.bf16.mxu0 %v262
    %1578 = vmatmul.mubr.bf16.gmra.mrb[0].mxu0 %v261
    %v1579 = vpop.f32.mrb[0].mxu0
    %v1580 = vadd.f32 %v488, %v1579
    %v1581 = vpop.f32.mrb[0].mxu0
    %v1582 = vadd.f32 %v492, %v1581
    %v1583 = vpop.f32.mrb[0].mxu0
    %v1584 = vadd.f32 %v488, %v1583
    %v1585 = vpop.f32.mrb[0].mxu0
    %v1586 = vadd.f32 %v492, %v1585
    %1587 = vmatprep.mubr.bf16.mxu0 %v268
    %1588 = vmatmul.mubr.bf16.gmra.mrb[0].mxu0 %v267
    %v1589 = vpop.f32.mrb[0].mxu0
    %v1590 = vadd.f32 %v488, %v1589
    %v1591 = vpop.f32.mrb[0].mxu0
    %v1592 = vadd.f32 %v492, %v1591
    %v1593 = vpop.f32.mrb[0].mxu0
    %v1594 = vadd.f32 %v488, %v1593
    %v1595 = vpop.f32.mrb[0].mxu0
    %v1596 = vadd.f32 %v492, %v1595
    %1597 = vmatprep.mubr.bf16.mxu0 %v274
    %1598 = vmatmul.mubr.bf16.gmra.mrb[0].mxu0 %v273
    %v1599 = vpop.f32.mrb[0].mxu0
    %v1600 = vadd.f32 %v488, %v1599
    %v1601 = vpop.f32.mrb[0].mxu0
    %v1602 = vadd.f32 %v492, %v1601
    %v1603 = vpop.f32.mrb[0].mxu0
    %v1604 = vadd.f32 %v488, %v1603
    %v1605 = vpop.f32.mrb[0].mxu0
    %v1606 = vadd.f32 %v492, %v1605
    %1607 = vmatprep.mubr.bf16.mxu0 %v280
    %1608 = vmatmul.mubr.bf16.gmra.mrb[0].mxu0 %v279
    %v1609 = vpop.f32.mrb[0].mxu0
    %v1610 = vadd.f32 %v488, %v1609
    %v1611 = vpop.f32.mrb[0].mxu0
    %v1612 = vadd.f32 %v492, %v1611
    %v1613 = vpop.f32.mrb[0].mxu0
    %v1614 = vadd.f32 %v488, %v1613
    %v1615 = vpop.f32.mrb[0].mxu0
    %v1616 = vadd.f32 %v492, %v1615
    %1617 = vmatprep.mubr.bf16.mxu0 %v286
    %1618 = vmatmul.mubr.bf16.gmra.mrb[0].mxu0 %v285
    %v1619 = vpop.f32.mrb[0].mxu0
    %v1620 = vadd.f32 %v488, %v1619
    %v1621 = vpop.f32.mrb[0].mxu0
    %v1622 = vadd.f32 %v492, %v1621
    %v1623 = vpop.f32.mrb[0].mxu0
    %v1624 = vpop.f32.mrb[0].mxu0
    %1625 = vdwg.mxu0
    %1626 = vmatprep.subr.bf16.mxu0 %v1146
    %1627 = vmatpush1.bf16.msra.mxu0 %v1145
    %1628 = vmatprep.subr.bf16.mxu0 %v1150
    %1629 = vmatpush1.bf16.msra.mxu0 %v1149
    %1630 = vmatprep.subr.bf16.mxu0 %v1154
    %1631 = vmatpush1.bf16.msra.mxu0 %v1153
    %1632 = vmatprep.subr.bf16.mxu0 %v1158
    %1633 = vmatpush1.bf16.msra.mxu0 %v1157
    %1634 = vmatprep.subr.bf16.mxu0 %v1162
    %1635 = vmatpush1.bf16.msra.mxu0 %v1161
    %1636 = vmatprep.subr.bf16.mxu0 %v1166
    %1637 = vmatpush1.bf16.msra.mxu0 %v1165
    %1638 = vmatprep.subr.bf16.mxu0 %v1170
    %1639 = vmatpush1.bf16.msra.mxu0 %v1169
    %1640 = vmatprep.subr.bf16.mxu0 %v1174
    %1641 = vmatpush1.bf16.msra.mxu0 %v1173
    %1642 = vmatprep.subr.bf16.mxu0 %v1178
    %1643 = vmatpush1.bf16.msra.mxu0 %v1177
    %1644 = vmatprep.subr.bf16.mxu0 %v1182
    %1645 = vmatpush1.bf16.msra.mxu0 %v1181
    %1646 = vmatprep.subr.bf16.mxu0 %v1186
    %1647 = vmatpush1.bf16.msra.mxu0 %v1185
    %1648 = vmatprep.subr.bf16.mxu0 %v1190
    %1649 = vmatpush1.bf16.msra.mxu0 %v1189
    %1650 = vmatprep.subr.bf16.mxu0 %v1194
    %1651 = vmatpush1.bf16.msra.mxu0 %v1193
    %1652 = vmatprep.subr.bf16.mxu0 %v1198
    %1653 = vmatpush1.bf16.msra.mxu0 %v1197
    %1654 = vmatprep.subr.bf16.mxu0 %v1202
    %1655 = vmatpush1.bf16.msra.mxu0 %v1201
    %1656 = vmatprep.subr.bf16.mxu0 %v1206
    %1657 = vmatpush1.bf16.msra.mxu0 %v1205
    %1658 = vmatprep.mubr.bf16.mxu0 %v216
    %1659 = vmatmul.mubr.bf16.gmra.mrb[0].mxu0 %v215
    %v1660 = vpop.f32.mrb[0].mxu0
    %v1661 = vadd.f32 %v1500, %v1660
    %v1662 = vpop.f32.mrb[0].mxu0
    %v1663 = vadd.f32 %v1502, %v1662
    %v1664 = vpop.f32.mrb[0].mxu0
    %v1665 = vadd.f32 %v1504, %v1664
    %v1666 = vpop.f32.mrb[0].mxu0
    %v1667 = vadd.f32 %v1506, %v1666
    %1668 = vmatprep.mubr.bf16.mxu0 %v222
    %1669 = vmatmul.mubr.bf16.gmra.mrb[0].mxu0 %v221
    %v1670 = vpop.f32.mrb[0].mxu0
    %v1671 = vadd.f32 %v1510, %v1670
    %v1672 = vpop.f32.mrb[0].mxu0
    %v1673 = vadd.f32 %v1512, %v1672
    %v1674 = vpop.f32.mrb[0].mxu0
    %v1675 = vadd.f32 %v1514, %v1674
    %v1676 = vpop.f32.mrb[0].mxu0
    %v1677 = vadd.f32 %v1516, %v1676
    %1678 = vmatprep.mubr.bf16.mxu0 %v228
    %1679 = vmatmul.mubr.bf16.gmra.mrb[0].mxu0 %v227
    %v1680 = vpop.f32.mrb[0].mxu0
    %v1681 = vadd.f32 %v1520, %v1680
    %v1682 = vpop.f32.mrb[0].mxu0
    %v1683 = vadd.f32 %v1522, %v1682
    %v1684 = vpop.f32.mrb[0].mxu0
    %v1685 = vadd.f32 %v1524, %v1684
    %v1686 = vpop.f32.mrb[0].mxu0
    %v1687 = vadd.f32 %v1526, %v1686
    %1688 = vmatprep.mubr.bf16.mxu0 %v234
    %1689 = vmatmul.mubr.bf16.gmra.mrb[0].mxu0 %v233
    %v1690 = vpop.f32.mrb[0].mxu0
    %v1691 = vadd.f32 %v1530, %v1690
    %v1692 = vpop.f32.mrb[0].mxu0
    %v1693 = vadd.f32 %v1532, %v1692
    %v1694 = vpop.f32.mrb[0].mxu0
    %v1695 = vadd.f32 %v1534, %v1694
    %v1696 = vpop.f32.mrb[0].mxu0
    %v1697 = vadd.f32 %v1536, %v1696
    %1698 = vmatprep.mubr.bf16.mxu0 %v240
    %1699 = vmatmul.mubr.bf16.gmra.mrb[0].mxu0 %v239
    %v1700 = vpop.f32.mrb[0].mxu0
    %v1701 = vadd.f32 %v1540, %v1700
    %v1702 = vpop.f32.mrb[0].mxu0
    %v1703 = vadd.f32 %v1542, %v1702
    %v1704 = vpop.f32.mrb[0].mxu0
    %v1705 = vadd.f32 %v1544, %v1704
    %v1706 = vpop.f32.mrb[0].mxu0
    %v1707 = vadd.f32 %v1546, %v1706
    %1708 = vmatprep.mubr.bf16.mxu0 %v246
    %1709 = vmatmul.mubr.bf16.gmra.mrb[0].mxu0 %v245
    %v1710 = vpop.f32.mrb[0].mxu0
    %v1711 = vadd.f32 %v1550, %v1710
    %v1712 = vpop.f32.mrb[0].mxu0
    %v1713 = vadd.f32 %v1552, %v1712
    %v1714 = vpop.f32.mrb[0].mxu0
    %v1715 = vadd.f32 %v1554, %v1714
    %v1716 = vpop.f32.mrb[0].mxu0
    %v1717 = vadd.f32 %v1556, %v1716
    %1718 = vmatprep.mubr.bf16.mxu0 %v252
    %1719 = vmatmul.mubr.bf16.gmra.mrb[0].mxu0 %v251
    %v1720 = vpop.f32.mrb[0].mxu0
    %v1721 = vadd.f32 %v1560, %v1720
    %v1722 = vpop.f32.mrb[0].mxu0
    %v1723 = vadd.f32 %v1562, %v1722
    %v1724 = vpop.f32.mrb[0].mxu0
    %v1725 = vadd.f32 %v1564, %v1724
    %v1726 = vpop.f32.mrb[0].mxu0
    %v1727 = vadd.f32 %v1566, %v1726
    %1728 = vmatprep.mubr.bf16.mxu0 %v258
    %1729 = vmatmul.mubr.bf16.gmra.mrb[0].mxu0 %v257
    %v1730 = vpop.f32.mrb[0].mxu0
    %v1731 = vadd.f32 %v1570, %v1730
    %v1732 = vpop.f32.mrb[0].mxu0
    %v1733 = vadd.f32 %v1572, %v1732
    %v1734 = vpop.f32.mrb[0].mxu0
    %v1735 = vadd.f32 %v1574, %v1734
    %v1736 = vpop.f32.mrb[0].mxu0
    %v1737 = vadd.f32 %v1576, %v1736
    %1738 = vmatprep.mubr.bf16.mxu0 %v264
    %1739 = vmatmul.mubr.bf16.gmra.mrb[0].mxu0 %v263
    %v1740 = vpop.f32.mrb[0].mxu0
    %v1741 = vadd.f32 %v1580, %v1740
    %v1742 = vpop.f32.mrb[0].mxu0
    %v1743 = vadd.f32 %v1582, %v1742
    %v1744 = vpop.f32.mrb[0].mxu0
    %v1745 = vadd.f32 %v1584, %v1744
    %v1746 = vpop.f32.mrb[0].mxu0
    %v1747 = vadd.f32 %v1586, %v1746
    %1748 = vmatprep.mubr.bf16.mxu0 %v270
    %1749 = vmatmul.mubr.bf16.gmra.mrb[0].mxu0 %v269
    %v1750 = vpop.f32.mrb[0].mxu0
    %v1751 = vadd.f32 %v1590, %v1750
    %v1752 = vpop.f32.mrb[0].mxu0
    %v1753 = vadd.f32 %v1592, %v1752
    %v1754 = vpop.f32.mrb[0].mxu0
    %v1755 = vadd.f32 %v1594, %v1754
    %v1756 = vpop.f32.mrb[0].mxu0
    %v1757 = vadd.f32 %v1596, %v1756
    %1758 = vmatprep.mubr.bf16.mxu0 %v276
    %1759 = vmatmul.mubr.bf16.gmra.mrb[0].mxu0 %v275
    %v1760 = vpop.f32.mrb[0].mxu0
    %v1761 = vadd.f32 %v1600, %v1760
    %v1762 = vpop.f32.mrb[0].mxu0
    %v1763 = vadd.f32 %v1602, %v1762
    %v1764 = vpop.f32.mrb[0].mxu0
    %v1765 = vadd.f32 %v1604, %v1764
    %v1766 = vpop.f32.mrb[0].mxu0
    %v1767 = vadd.f32 %v1606, %v1766
    %1768 = vmatprep.mubr.bf16.mxu0 %v282
    %1769 = vmatmul.mubr.bf16.gmra.mrb[0].mxu0 %v281
    %v1770 = vpop.f32.mrb[0].mxu0
    %v1771 = vadd.f32 %v1610, %v1770
    %v1772 = vpop.f32.mrb[0].mxu0
    %v1773 = vadd.f32 %v1612, %v1772
    %v1774 = vpop.f32.mrb[0].mxu0
    %v1775 = vadd.f32 %v1614, %v1774
    %v1776 = vpop.f32.mrb[0].mxu0
    %v1777 = vadd.f32 %v1616, %v1776
    %1778 = vmatprep.mubr.bf16.mxu0 %v288
    %1779 = vmatmul.mubr.bf16.gmra.mrb[0].mxu0 %v287
    %v1780 = vpop.f32.mrb[0].mxu0
    %v1781 = vadd.f32 %v1620, %v1780
    %v1782 = vpop.f32.mrb[0].mxu0
    %v1783 = vadd.f32 %v1622, %v1782
    %v1784 = vpop.f32.mrb[0].mxu0
    %v1785 = vpop.f32.mrb[0].mxu0
    %1786 = vdwg.mxu0
    %1787 = vmatprep.subr.bf16.mxu0 %v1210
    %1788 = vmatpush1.bf16.msra.mxu0 %v1209
    %1789 = vmatprep.subr.bf16.mxu0 %v1214
    %1790 = vmatpush1.bf16.msra.mxu0 %v1213
    %1791 = vmatprep.subr.bf16.mxu0 %v1218
    %1792 = vmatpush1.bf16.msra.mxu0 %v1217
    %1793 = vmatprep.subr.bf16.mxu0 %v1222
    %1794 = vmatpush1.bf16.msra.mxu0 %v1221
    %1795 = vmatprep.subr.bf16.mxu0 %v1226
    %1796 = vmatpush1.bf16.msra.mxu0 %v1225
    %1797 = vmatprep.subr.bf16.mxu0 %v1230
    %1798 = vmatpush1.bf16.msra.mxu0 %v1229
    %1799 = vmatprep.subr.bf16.mxu0 %v1234
    %1800 = vmatpush1.bf16.msra.mxu0 %v1233
    %1801 = vmatprep.subr.bf16.mxu0 %v1238
    %1802 = vmatpush1.bf16.msra.mxu0 %v1237
    %1803 = vmatprep.subr.bf16.mxu0 %v1242
    %1804 = vmatpush1.bf16.msra.mxu0 %v1241
    %1805 = vmatprep.subr.bf16.mxu0 %v1246
    %1806 = vmatpush1.bf16.msra.mxu0 %v1245
    %1807 = vmatprep.subr.bf16.mxu0 %v1250
    %1808 = vmatpush1.bf16.msra.mxu0 %v1249
    %1809 = vmatprep.subr.bf16.mxu0 %v1254
    %1810 = vmatpush1.bf16.msra.mxu0 %v1253
    %1811 = vmatprep.subr.bf16.mxu0 %v1258
    %1812 = vmatpush1.bf16.msra.mxu0 %v1257
    %1813 = vmatprep.subr.bf16.mxu0 %v1262
    %1814 = vmatpush1.bf16.msra.mxu0 %v1261
    %1815 = vmatprep.subr.bf16.mxu0 %v1266
    %1816 = vmatpush1.bf16.msra.mxu0 %v1265
    %1817 = vmatprep.subr.bf16.mxu0 %v1270
    %1818 = vmatpush1.bf16.msra.mxu0 %v1269
    %1819 = vmatprep.mubr.bf16.mxu0 %v218
    %1820 = vmatmul.mubr.bf16.gmra.mrb[0].mxu0 %v217
    %v1821 = vpop.f32.mrb[0].mxu0
    %v1822 = vadd.f32 %v1661, %v1821
    %v1823 = vpop.f32.mrb[0].mxu0
    %v1824 = vadd.f32 %v1663, %v1823
    %v1825 = vpop.f32.mrb[0].mxu0
    %v1826 = vadd.f32 %v1665, %v1825
    %v1827 = vpop.f32.mrb[0].mxu0
    %v1828 = vadd.f32 %v1667, %v1827
    %1829 = vmatprep.mubr.bf16.mxu0 %v224
    %1830 = vmatmul.mubr.bf16.gmra.mrb[0].mxu0 %v223
    %v1831 = vpop.f32.mrb[0].mxu0
    %v1832 = vadd.f32 %v1671, %v1831
    %v1833 = vpop.f32.mrb[0].mxu0
    %v1834 = vadd.f32 %v1673, %v1833
    %v1835 = vpop.f32.mrb[0].mxu0
    %v1836 = vadd.f32 %v1675, %v1835
    %v1837 = vpop.f32.mrb[0].mxu0
    %v1838 = vadd.f32 %v1677, %v1837
    %1839 = vmatprep.mubr.bf16.mxu0 %v230
    %1840 = vmatmul.mubr.bf16.gmra.mrb[0].mxu0 %v229
    %v1841 = vpop.f32.mrb[0].mxu0
    %v1842 = vadd.f32 %v1681, %v1841
    %v1843 = vpop.f32.mrb[0].mxu0
    %v1844 = vadd.f32 %v1683, %v1843
    %v1845 = vpop.f32.mrb[0].mxu0
    %v1846 = vadd.f32 %v1685, %v1845
    %v1847 = vpop.f32.mrb[0].mxu0
    %v1848 = vadd.f32 %v1687, %v1847
    %1849 = vmatprep.mubr.bf16.mxu0 %v236
    %1850 = vmatmul.mubr.bf16.gmra.mrb[0].mxu0 %v235
    %v1851 = vpop.f32.mrb[0].mxu0
    %v1852 = vadd.f32 %v1691, %v1851
    %v1853 = vpop.f32.mrb[0].mxu0
    %v1854 = vadd.f32 %v1693, %v1853
    %v1855 = vpop.f32.mrb[0].mxu0
    %v1856 = vadd.f32 %v1695, %v1855
    %v1857 = vpop.f32.mrb[0].mxu0
    %v1858 = vadd.f32 %v1697, %v1857
    %1859 = vmatprep.mubr.bf16.mxu0 %v242
    %1860 = vmatmul.mubr.bf16.gmra.mrb[0].mxu0 %v241
    %v1861 = vpop.f32.mrb[0].mxu0
    %v1862 = vadd.f32 %v1701, %v1861
    %v1863 = vpop.f32.mrb[0].mxu0
    %v1864 = vadd.f32 %v1703, %v1863
    %v1865 = vpop.f32.mrb[0].mxu0
    %v1866 = vadd.f32 %v1705, %v1865
    %v1867 = vpop.f32.mrb[0].mxu0
    %v1868 = vadd.f32 %v1707, %v1867
    %1869 = vmatprep.mubr.bf16.mxu0 %v248
    %1870 = vmatmul.mubr.bf16.gmra.mrb[0].mxu0 %v247
    %v1871 = vpop.f32.mrb[0].mxu0
    %v1872 = vadd.f32 %v1711, %v1871
    %v1873 = vpop.f32.mrb[0].mxu0
    %v1874 = vadd.f32 %v1713, %v1873
    %v1875 = vpop.f32.mrb[0].mxu0
    %v1876 = vadd.f32 %v1715, %v1875
    %v1877 = vpop.f32.mrb[0].mxu0
    %v1878 = vadd.f32 %v1717, %v1877
    %1879 = vmatprep.mubr.bf16.mxu0 %v254
    %1880 = vmatmul.mubr.bf16.gmra.mrb[0].mxu0 %v253
    %v1881 = vpop.f32.mrb[0].mxu0
    %v1882 = vadd.f32 %v1721, %v1881
    %v1883 = vpop.f32.mrb[0].mxu0
    %v1884 = vadd.f32 %v1723, %v1883
    %v1885 = vpop.f32.mrb[0].mxu0
    %v1886 = vadd.f32 %v1725, %v1885
    %v1887 = vpop.f32.mrb[0].mxu0
    %v1888 = vadd.f32 %v1727, %v1887
    %1889 = vmatprep.mubr.bf16.mxu0 %v260
    %1890 = vmatmul.mubr.bf16.gmra.mrb[0].mxu0 %v259
    %v1891 = vpop.f32.mrb[0].mxu0
    %v1892 = vadd.f32 %v1731, %v1891
    %v1893 = vpop.f32.mrb[0].mxu0
    %v1894 = vadd.f32 %v1733, %v1893
    %v1895 = vpop.f32.mrb[0].mxu0
    %v1896 = vadd.f32 %v1735, %v1895
    %v1897 = vpop.f32.mrb[0].mxu0
    %v1898 = vadd.f32 %v1737, %v1897
    %1899 = vmatprep.mubr.bf16.mxu0 %v266
    %1900 = vmatmul.mubr.bf16.gmra.mrb[0].mxu0 %v265
    %v1901 = vpop.f32.mrb[0].mxu0
    %v1902 = vadd.f32 %v1741, %v1901
    %v1903 = vpop.f32.mrb[0].mxu0
    %v1904 = vadd.f32 %v1743, %v1903
    %v1905 = vpop.f32.mrb[0].mxu0
    %v1906 = vadd.f32 %v1745, %v1905
    %v1907 = vpop.f32.mrb[0].mxu0
    %v1908 = vadd.f32 %v1747, %v1907
    %1909 = vmatprep.mubr.bf16.mxu0 %v272
    %1910 = vmatmul.mubr.bf16.gmra.mrb[0].mxu0 %v271
    %v1911 = vpop.f32.mrb[0].mxu0
    %v1912 = vadd.f32 %v1751, %v1911
    %v1913 = vpop.f32.mrb[0].mxu0
    %v1914 = vadd.f32 %v1753, %v1913
    %v1915 = vpop.f32.mrb[0].mxu0
    %v1916 = vadd.f32 %v1755, %v1915
    %v1917 = vpop.f32.mrb[0].mxu0
    %v1918 = vadd.f32 %v1757, %v1917
    %1919 = vmatprep.mubr.bf16.mxu0 %v278
    %1920 = vmatmul.mubr.bf16.gmra.mrb[0].mxu0 %v277
    %v1921 = vpop.f32.mrb[0].mxu0
    %v1922 = vadd.f32 %v1761, %v1921
    %v1923 = vpop.f32.mrb[0].mxu0
    %v1924 = vadd.f32 %v1763, %v1923
    %v1925 = vpop.f32.mrb[0].mxu0
    %v1926 = vadd.f32 %v1765, %v1925
    %v1927 = vpop.f32.mrb[0].mxu0
    %v1928 = vadd.f32 %v1767, %v1927
    %1929 = vmatprep.mubr.bf16.mxu0 %v284
    %1930 = vmatmul.mubr.bf16.gmra.mrb[0].mxu0 %v283
    %v1931 = vpop.f32.mrb[0].mxu0
    %v1932 = vadd.f32 %v1771, %v1931
    %v1933 = vpop.f32.mrb[0].mxu0
    %v1934 = vadd.f32 %v1773, %v1933
    %v1935 = vpop.f32.mrb[0].mxu0
    %v1936 = vadd.f32 %v1775, %v1935
    %v1937 = vpop.f32.mrb[0].mxu0
    %v1938 = vadd.f32 %v1777, %v1937
    %1939 = vmatprep.mubr.bf16.mxu0 %v290
    %1940 = vmatmul.mubr.bf16.gmra.mrb[0].mxu0 %v289
    %v1941 = vpop.f32.mrb[0].mxu0
    %v1942 = vadd.f32 %v1781, %v1941
    %v1943 = vpop.f32.mrb[0].mxu0
    %v1944 = vadd.f32 %v1783, %v1943
    %v1945 = vpop.f32.mrb[0].mxu0
    %v1946 = vpop.f32.mrb[0].mxu0
    %1947 = vdwg.mxu0
    %1948 = vmatprep.subr.bf16.mxu0 %v1084
    %1949 = vmatpush1.bf16.msra.mxu0 %v1083
    %1950 = vmatprep.subr.bf16.mxu0 %v1088
    %1951 = vmatpush1.bf16.msra.mxu0 %v1087
    %1952 = vmatprep.subr.bf16.mxu0 %v1092
    %1953 = vmatpush1.bf16.msra.mxu0 %v1091
    %1954 = vmatprep.subr.bf16.mxu0 %v1096
    %1955 = vmatpush1.bf16.msra.mxu0 %v1095
    %1956 = vmatprep.subr.bf16.mxu0 %v1100
    %1957 = vmatpush1.bf16.msra.mxu0 %v1099
    %1958 = vmatprep.subr.bf16.mxu0 %v1104
    %1959 = vmatpush1.bf16.msra.mxu0 %v1103
    %1960 = vmatprep.subr.bf16.mxu0 %v1108
    %1961 = vmatpush1.bf16.msra.mxu0 %v1107
    %1962 = vmatprep.subr.bf16.mxu0 %v1112
    %1963 = vmatpush1.bf16.msra.mxu0 %v1111
    %1964 = vmatprep.subr.bf16.mxu0 %v1116
    %1965 = vmatpush1.bf16.msra.mxu0 %v1115
    %1966 = vmatprep.subr.bf16.mxu0 %v1120
    %1967 = vmatpush1.bf16.msra.mxu0 %v1119
    %1968 = vmatprep.subr.bf16.mxu0 %v1124
    %1969 = vmatpush1.bf16.msra.mxu0 %v1123
    %1970 = vmatprep.subr.bf16.mxu0 %v1128
    %1971 = vmatpush1.bf16.msra.mxu0 %v1127
    %1972 = vmatprep.subr.bf16.mxu0 %v1132
    %1973 = vmatpush1.bf16.msra.mxu0 %v1131
    %1974 = vmatprep.subr.bf16.mxu0 %v1136
    %1975 = vmatpush1.bf16.msra.mxu0 %v1135
    %1976 = vmatprep.subr.bf16.mxu0 %v1140
    %1977 = vmatpush1.bf16.msra.mxu0 %v1139
    %1978 = vmatprep.subr.bf16.mxu0 %v1144
    %1979 = vmatpush1.bf16.msra.mxu0 %v1143
    %1980 = vmatprep.mubr.bf16.mxu0 %v214
    %1981 = vmatmul.mubr.bf16.gmra.mrb[0].mxu0 %v213
    %v1982 = vpop.f32.mrb[0].mxu0
    %v1983 = vadd.f32 %v496, %v1982
    %v1984 = vpop.f32.mrb[0].mxu0
    %v1985 = vadd.f32 %v500, %v1984
    %v1986 = vpop.f32.mrb[0].mxu0
    %v1987 = vadd.f32 %v496, %v1986
    %v1988 = vpop.f32.mrb[0].mxu0
    %v1989 = vadd.f32 %v500, %v1988
    %1990 = vmatprep.mubr.bf16.mxu0 %v220
    %1991 = vmatmul.mubr.bf16.gmra.mrb[0].mxu0 %v219
    %v1992 = vpop.f32.mrb[0].mxu0
    %v1993 = vadd.f32 %v496, %v1992
    %v1994 = vpop.f32.mrb[0].mxu0
    %v1995 = vadd.f32 %v500, %v1994
    %v1996 = vpop.f32.mrb[0].mxu0
    %v1997 = vadd.f32 %v496, %v1996
    %v1998 = vpop.f32.mrb[0].mxu0
    %v1999 = vadd.f32 %v500, %v1998
    %2000 = vmatprep.mubr.bf16.mxu0 %v226
    %2001 = vmatmul.mubr.bf16.gmra.mrb[0].mxu0 %v225
    %v2002 = vpop.f32.mrb[0].mxu0
    %v2003 = vadd.f32 %v496, %v2002
    %v2004 = vpop.f32.mrb[0].mxu0
    %v2005 = vadd.f32 %v500, %v2004
    %v2006 = vpop.f32.mrb[0].mxu0
    %v2007 = vadd.f32 %v496, %v2006
    %v2008 = vpop.f32.mrb[0].mxu0
    %v2009 = vadd.f32 %v500, %v2008
    %2010 = vmatprep.mubr.bf16.mxu0 %v232
    %2011 = vmatmul.mubr.bf16.gmra.mrb[0].mxu0 %v231
    %v2012 = vpop.f32.mrb[0].mxu0
    %v2013 = vadd.f32 %v496, %v2012
    %v2014 = vpop.f32.mrb[0].mxu0
    %v2015 = vadd.f32 %v500, %v2014
    %v2016 = vpop.f32.mrb[0].mxu0
    %v2017 = vadd.f32 %v496, %v2016
    %v2018 = vpop.f32.mrb[0].mxu0
    %v2019 = vadd.f32 %v500, %v2018
    %2020 = vmatprep.mubr.bf16.mxu0 %v238
    %2021 = vmatmul.mubr.bf16.gmra.mrb[0].mxu0 %v237
    %v2022 = vpop.f32.mrb[0].mxu0
    %v2023 = vadd.f32 %v496, %v2022
    %v2024 = vpop.f32.mrb[0].mxu0
    %v2025 = vadd.f32 %v500, %v2024
    %v2026 = vpop.f32.mrb[0].mxu0
    %v2027 = vadd.f32 %v496, %v2026
    %v2028 = vpop.f32.mrb[0].mxu0
    %v2029 = vadd.f32 %v500, %v2028
    %2030 = vmatprep.mubr.bf16.mxu0 %v244
    %2031 = vmatmul.mubr.bf16.gmra.mrb[0].mxu0 %v243
    %v2032 = vpop.f32.mrb[0].mxu0
    %v2033 = vadd.f32 %v496, %v2032
    %v2034 = vpop.f32.mrb[0].mxu0
    %v2035 = vadd.f32 %v500, %v2034
    %v2036 = vpop.f32.mrb[0].mxu0
    %v2037 = vadd.f32 %v496, %v2036
    %v2038 = vpop.f32.mrb[0].mxu0
    %v2039 = vadd.f32 %v500, %v2038
    %2040 = vmatprep.mubr.bf16.mxu0 %v250
    %2041 = vmatmul.mubr.bf16.gmra.mrb[0].mxu0 %v249
    %v2042 = vpop.f32.mrb[0].mxu0
    %v2043 = vadd.f32 %v496, %v2042
    %v2044 = vpop.f32.mrb[0].mxu0
    %v2045 = vadd.f32 %v500, %v2044
    %v2046 = vpop.f32.mrb[0].mxu0
    %v2047 = vadd.f32 %v496, %v2046
    %v2048 = vpop.f32.mrb[0].mxu0
    %v2049 = vadd.f32 %v500, %v2048
    %2050 = vmatprep.mubr.bf16.mxu0 %v256
    %2051 = vmatmul.mubr.bf16.gmra.mrb[0].mxu0 %v255
    %v2052 = vpop.f32.mrb[0].mxu0
    %v2053 = vadd.f32 %v496, %v2052
    %v2054 = vpop.f32.mrb[0].mxu0
    %v2055 = vadd.f32 %v500, %v2054
    %v2056 = vpop.f32.mrb[0].mxu0
    %v2057 = vadd.f32 %v496, %v2056
    %v2058 = vpop.f32.mrb[0].mxu0
    %v2059 = vadd.f32 %v500, %v2058
    %2060 = vmatprep.mubr.bf16.mxu0 %v262
    %2061 = vmatmul.mubr.bf16.gmra.mrb[0].mxu0 %v261
    %v2062 = vpop.f32.mrb[0].mxu0
    %v2063 = vadd.f32 %v496, %v2062
    %v2064 = vpop.f32.mrb[0].mxu0
    %v2065 = vadd.f32 %v500, %v2064
    %v2066 = vpop.f32.mrb[0].mxu0
    %v2067 = vadd.f32 %v496, %v2066
    %v2068 = vpop.f32.mrb[0].mxu0
    %v2069 = vadd.f32 %v500, %v2068
    %2070 = vmatprep.mubr.bf16.mxu0 %v268
    %2071 = vmatmul.mubr.bf16.gmra.mrb[0].mxu0 %v267
    %v2072 = vpop.f32.mrb[0].mxu0
    %v2073 = vadd.f32 %v496, %v2072
    %v2074 = vpop.f32.mrb[0].mxu0
    %v2075 = vadd.f32 %v500, %v2074
    %v2076 = vpop.f32.mrb[0].mxu0
    %v2077 = vadd.f32 %v496, %v2076
    %v2078 = vpop.f32.mrb[0].mxu0
    %v2079 = vadd.f32 %v500, %v2078
    %2080 = vmatprep.mubr.bf16.mxu0 %v274
    %2081 = vmatmul.mubr.bf16.gmra.mrb[0].mxu0 %v273
    %v2082 = vpop.f32.mrb[0].mxu0
    %v2083 = vadd.f32 %v496, %v2082
    %v2084 = vpop.f32.mrb[0].mxu0
    %v2085 = vadd.f32 %v500, %v2084
    %v2086 = vpop.f32.mrb[0].mxu0
    %v2087 = vadd.f32 %v496, %v2086
    %v2088 = vpop.f32.mrb[0].mxu0
    %v2089 = vadd.f32 %v500, %v2088
    %2090 = vmatprep.mubr.bf16.mxu0 %v280
    %2091 = vmatmul.mubr.bf16.gmra.mrb[0].mxu0 %v279
    %v2092 = vpop.f32.mrb[0].mxu0
    %v2093 = vadd.f32 %v496, %v2092
    %v2094 = vpop.f32.mrb[0].mxu0
    %v2095 = vadd.f32 %v500, %v2094
    %v2096 = vpop.f32.mrb[0].mxu0
    %v2097 = vadd.f32 %v496, %v2096
    %v2098 = vpop.f32.mrb[0].mxu0
    %v2099 = vadd.f32 %v500, %v2098
    %2100 = vmatprep.mubr.bf16.mxu0 %v286
    %2101 = vmatmul.mubr.bf16.gmra.mrb[0].mxu0 %v285
    %v2102 = vpop.f32.mrb[0].mxu0
    %v2103 = vadd.f32 %v496, %v2102
    %v2104 = vpop.f32.mrb[0].mxu0
    %v2105 = vadd.f32 %v500, %v2104
    %v2106 = vpop.f32.mrb[0].mxu0
    %v2107 = vpop.f32.mrb[0].mxu0
    %2108 = vdwg.mxu0
    %2109 = vmatprep.subr.bf16.mxu0 %v1148
    %2110 = vmatpush1.bf16.msra.mxu0 %v1147
    %2111 = vmatprep.subr.bf16.mxu0 %v1152
    %2112 = vmatpush1.bf16.msra.mxu0 %v1151
    %2113 = vmatprep.subr.bf16.mxu0 %v1156
    %2114 = vmatpush1.bf16.msra.mxu0 %v1155
    %2115 = vmatprep.subr.bf16.mxu0 %v1160
    %2116 = vmatpush1.bf16.msra.mxu0 %v1159
    %2117 = vmatprep.subr.bf16.mxu0 %v1164
    %2118 = vmatpush1.bf16.msra.mxu0 %v1163
    %2119 = vmatprep.subr.bf16.mxu0 %v1168
    %2120 = vmatpush1.bf16.msra.mxu0 %v1167
    %2121 = vmatprep.subr.bf16.mxu0 %v1172
    %2122 = vmatpush1.bf16.msra.mxu0 %v1171
    %2123 = vmatprep.subr.bf16.mxu0 %v1176
    %2124 = vmatpush1.bf16.msra.mxu0 %v1175
    %2125 = vmatprep.subr.bf16.mxu0 %v1180
    %2126 = vmatpush1.bf16.msra.mxu0 %v1179
    %2127 = vmatprep.subr.bf16.mxu0 %v1184
    %2128 = vmatpush1.bf16.msra.mxu0 %v1183
    %2129 = vmatprep.subr.bf16.mxu0 %v1188
    %2130 = vmatpush1.bf16.msra.mxu0 %v1187
    %2131 = vmatprep.subr.bf16.mxu0 %v1192
    %2132 = vmatpush1.bf16.msra.mxu0 %v1191
    %2133 = vmatprep.subr.bf16.mxu0 %v1196
    %2134 = vmatpush1.bf16.msra.mxu0 %v1195
    %2135 = vmatprep.subr.bf16.mxu0 %v1200
    %2136 = vmatpush1.bf16.msra.mxu0 %v1199
    %2137 = vmatprep.subr.bf16.mxu0 %v1204
    %2138 = vmatpush1.bf16.msra.mxu0 %v1203
    %2139 = vmatprep.subr.bf16.mxu0 %v1208
    %2140 = vmatpush1.bf16.msra.mxu0 %v1207
    %2141 = vmatprep.mubr.bf16.mxu0 %v216
    %2142 = vmatmul.mubr.bf16.gmra.mrb[0].mxu0 %v215
    %v2143 = vpop.f32.mrb[0].mxu0
    %v2144 = vadd.f32 %v1983, %v2143
    %v2145 = vpop.f32.mrb[0].mxu0
    %v2146 = vadd.f32 %v1985, %v2145
    %v2147 = vpop.f32.mrb[0].mxu0
    %v2148 = vadd.f32 %v1987, %v2147
    %v2149 = vpop.f32.mrb[0].mxu0
    %v2150 = vadd.f32 %v1989, %v2149
    %2151 = vmatprep.mubr.bf16.mxu0 %v222
    %2152 = vmatmul.mubr.bf16.gmra.mrb[0].mxu0 %v221
    %v2153 = vpop.f32.mrb[0].mxu0
    %v2154 = vadd.f32 %v1993, %v2153
    %v2155 = vpop.f32.mrb[0].mxu0
    %v2156 = vadd.f32 %v1995, %v2155
    %v2157 = vpop.f32.mrb[0].mxu0
    %v2158 = vadd.f32 %v1997, %v2157
    %v2159 = vpop.f32.mrb[0].mxu0
    %v2160 = vadd.f32 %v1999, %v2159
    %2161 = vmatprep.mubr.bf16.mxu0 %v228
    %2162 = vmatmul.mubr.bf16.gmra.mrb[0].mxu0 %v227
    %v2163 = vpop.f32.mrb[0].mxu0
    %v2164 = vadd.f32 %v2003, %v2163
    %v2165 = vpop.f32.mrb[0].mxu0
    %v2166 = vadd.f32 %v2005, %v2165
    %v2167 = vpop.f32.mrb[0].mxu0
    %v2168 = vadd.f32 %v2007, %v2167
    %v2169 = vpop.f32.mrb[0].mxu0
    %v2170 = vadd.f32 %v2009, %v2169
    %2171 = vmatprep.mubr.bf16.mxu0 %v234
    %2172 = vmatmul.mubr.bf16.gmra.mrb[0].mxu0 %v233
    %v2173 = vpop.f32.mrb[0].mxu0
    %v2174 = vadd.f32 %v2013, %v2173
    %v2175 = vpop.f32.mrb[0].mxu0
    %v2176 = vadd.f32 %v2015, %v2175
    %v2177 = vpop.f32.mrb[0].mxu0
    %v2178 = vadd.f32 %v2017, %v2177
    %v2179 = vpop.f32.mrb[0].mxu0
    %v2180 = vadd.f32 %v2019, %v2179
    %2181 = vmatprep.mubr.bf16.mxu0 %v240
    %2182 = vmatmul.mubr.bf16.gmra.mrb[0].mxu0 %v239
    %v2183 = vpop.f32.mrb[0].mxu0
    %v2184 = vadd.f32 %v2023, %v2183
    %v2185 = vpop.f32.mrb[0].mxu0
    %v2186 = vadd.f32 %v2025, %v2185
    %v2187 = vpop.f32.mrb[0].mxu0
    %v2188 = vadd.f32 %v2027, %v2187
    %v2189 = vpop.f32.mrb[0].mxu0
    %v2190 = vadd.f32 %v2029, %v2189
    %2191 = vmatprep.mubr.bf16.mxu0 %v246
    %2192 = vmatmul.mubr.bf16.gmra.mrb[0].mxu0 %v245
    %v2193 = vpop.f32.mrb[0].mxu0
    %v2194 = vadd.f32 %v2033, %v2193
    %v2195 = vpop.f32.mrb[0].mxu0
    %v2196 = vadd.f32 %v2035, %v2195
    %v2197 = vpop.f32.mrb[0].mxu0
    %v2198 = vadd.f32 %v2037, %v2197
    %v2199 = vpop.f32.mrb[0].mxu0
    %v2200 = vadd.f32 %v2039, %v2199
    %2201 = vmatprep.mubr.bf16.mxu0 %v252
    %2202 = vmatmul.mubr.bf16.gmra.mrb[0].mxu0 %v251
    %v2203 = vpop.f32.mrb[0].mxu0
    %v2204 = vadd.f32 %v2043, %v2203
    %v2205 = vpop.f32.mrb[0].mxu0
    %v2206 = vadd.f32 %v2045, %v2205
    %v2207 = vpop.f32.mrb[0].mxu0
    %v2208 = vadd.f32 %v2047, %v2207
    %v2209 = vpop.f32.mrb[0].mxu0
    %v2210 = vadd.f32 %v2049, %v2209
    %2211 = vmatprep.mubr.bf16.mxu0 %v258
    %2212 = vmatmul.mubr.bf16.gmra.mrb[0].mxu0 %v257
    %v2213 = vpop.f32.mrb[0].mxu0
    %v2214 = vadd.f32 %v2053, %v2213
    %v2215 = vpop.f32.mrb[0].mxu0
    %v2216 = vadd.f32 %v2055, %v2215
    %v2217 = vpop.f32.mrb[0].mxu0
    %v2218 = vadd.f32 %v2057, %v2217
    %v2219 = vpop.f32.mrb[0].mxu0
    %v2220 = vadd.f32 %v2059, %v2219
    %2221 = vmatprep.mubr.bf16.mxu0 %v264
    %2222 = vmatmul.mubr.bf16.gmra.mrb[0].mxu0 %v263
    %v2223 = vpop.f32.mrb[0].mxu0
    %v2224 = vadd.f32 %v2063, %v2223
    %v2225 = vpop.f32.mrb[0].mxu0
    %v2226 = vadd.f32 %v2065, %v2225
    %v2227 = vpop.f32.mrb[0].mxu0
    %v2228 = vadd.f32 %v2067, %v2227
    %v2229 = vpop.f32.mrb[0].mxu0
    %v2230 = vadd.f32 %v2069, %v2229
    %2231 = vmatprep.mubr.bf16.mxu0 %v270
    %2232 = vmatmul.mubr.bf16.gmra.mrb[0].mxu0 %v269
    %v2233 = vpop.f32.mrb[0].mxu0
    %v2234 = vadd.f32 %v2073, %v2233
    %v2235 = vpop.f32.mrb[0].mxu0
    %v2236 = vadd.f32 %v2075, %v2235
    %v2237 = vpop.f32.mrb[0].mxu0
    %v2238 = vadd.f32 %v2077, %v2237
    %v2239 = vpop.f32.mrb[0].mxu0
    %v2240 = vadd.f32 %v2079, %v2239
    %2241 = vmatprep.mubr.bf16.mxu0 %v276
    %2242 = vmatmul.mubr.bf16.gmra.mrb[0].mxu0 %v275
    %v2243 = vpop.f32.mrb[0].mxu0
    %v2244 = vadd.f32 %v2083, %v2243
    %v2245 = vpop.f32.mrb[0].mxu0
    %v2246 = vadd.f32 %v2085, %v2245
    %v2247 = vpop.f32.mrb[0].mxu0
    %v2248 = vadd.f32 %v2087, %v2247
    %v2249 = vpop.f32.mrb[0].mxu0
    %v2250 = vadd.f32 %v2089, %v2249
    %2251 = vmatprep.mubr.bf16.mxu0 %v282
    %2252 = vmatmul.mubr.bf16.gmra.mrb[0].mxu0 %v281
    %v2253 = vpop.f32.mrb[0].mxu0
    %v2254 = vadd.f32 %v2093, %v2253
    %v2255 = vpop.f32.mrb[0].mxu0
    %v2256 = vadd.f32 %v2095, %v2255
    %v2257 = vpop.f32.mrb[0].mxu0
    %v2258 = vadd.f32 %v2097, %v2257
    %v2259 = vpop.f32.mrb[0].mxu0
    %v2260 = vadd.f32 %v2099, %v2259
    %2261 = vmatprep.mubr.bf16.mxu0 %v288
    %2262 = vmatmul.mubr.bf16.gmra.mrb[0].mxu0 %v287
    %v2263 = vpop.f32.mrb[0].mxu0
    %v2264 = vadd.f32 %v2103, %v2263
    %v2265 = vpop.f32.mrb[0].mxu0
    %v2266 = vadd.f32 %v2105, %v2265
    %v2267 = vpop.f32.mrb[0].mxu0
    %v2268 = vpop.f32.mrb[0].mxu0
    %2269 = vdwg.mxu0
    %2270 = vmatprep.subr.bf16.mxu0 %v1212
    %2271 = vmatpush1.bf16.msra.mxu0 %v1211
    %2272 = vmatprep.subr.bf16.mxu0 %v1216
    %2273 = vmatpush1.bf16.msra.mxu0 %v1215
    %2274 = vmatprep.subr.bf16.mxu0 %v1220
    %2275 = vmatpush1.bf16.msra.mxu0 %v1219
    %2276 = vmatprep.subr.bf16.mxu0 %v1224
    %2277 = vmatpush1.bf16.msra.mxu0 %v1223
    %2278 = vmatprep.subr.bf16.mxu0 %v1228
    %2279 = vmatpush1.bf16.msra.mxu0 %v1227
    %2280 = vmatprep.subr.bf16.mxu0 %v1232
    %2281 = vmatpush1.bf16.msra.mxu0 %v1231
    %2282 = vmatprep.subr.bf16.mxu0 %v1236
    %2283 = vmatpush1.bf16.msra.mxu0 %v1235
    %2284 = vmatprep.subr.bf16.mxu0 %v1240
    %2285 = vmatpush1.bf16.msra.mxu0 %v1239
    %2286 = vmatprep.subr.bf16.mxu0 %v1244
    %2287 = vmatpush1.bf16.msra.mxu0 %v1243
    %2288 = vmatprep.subr.bf16.mxu0 %v1248
    %2289 = vmatpush1.bf16.msra.mxu0 %v1247
    %2290 = vmatprep.subr.bf16.mxu0 %v1252
    %2291 = vmatpush1.bf16.msra.mxu0 %v1251
    %2292 = vmatprep.subr.bf16.mxu0 %v1256
    %2293 = vmatpush1.bf16.msra.mxu0 %v1255
    %2294 = vmatprep.subr.bf16.mxu0 %v1260
    %2295 = vmatpush1.bf16.msra.mxu0 %v1259
    %2296 = vmatprep.subr.bf16.mxu0 %v1264
    %2297 = vmatpush1.bf16.msra.mxu0 %v1263
    %2298 = vmatprep.subr.bf16.mxu0 %v1268
    %2299 = vmatpush1.bf16.msra.mxu0 %v1267
    %2300 = vmatprep.subr.bf16.mxu0 %v1272
    %2301 = vmatpush1.bf16.msra.mxu0 %v1271
    %2302 = vmatprep.mubr.bf16.mxu0 %v218
    %2303 = vmatmul.mubr.bf16.gmra.mrb[0].mxu0 %v217
    %v2304 = vpop.f32.mrb[0].mxu0
    %v2305 = vadd.f32 %v2144, %v2304
    %v2306 = vpop.f32.mrb[0].mxu0
    %v2307 = vadd.f32 %v2146, %v2306
    %v2308 = vpop.f32.mrb[0].mxu0
    %v2309 = vadd.f32 %v2148, %v2308
    %v2310 = vpop.f32.mrb[0].mxu0
    %v2311 = vadd.f32 %v2150, %v2310
    %2312 = vmatprep.mubr.bf16.mxu0 %v224
    %2313 = vmatmul.mubr.bf16.gmra.mrb[0].mxu0 %v223
    %v2314 = vpop.f32.mrb[0].mxu0
    %v2315 = vadd.f32 %v2154, %v2314
    %v2316 = vpop.f32.mrb[0].mxu0
    %v2317 = vadd.f32 %v2156, %v2316
    %v2318 = vpop.f32.mrb[0].mxu0
    %v2319 = vadd.f32 %v2158, %v2318
    %v2320 = vpop.f32.mrb[0].mxu0
    %v2321 = vadd.f32 %v2160, %v2320
    %2322 = vmatprep.mubr.bf16.mxu0 %v230
    %2323 = vmatmul.mubr.bf16.gmra.mrb[0].mxu0 %v229
    %v2324 = vpop.f32.mrb[0].mxu0
    %v2325 = vadd.f32 %v2164, %v2324
    %v2326 = vpop.f32.mrb[0].mxu0
    %v2327 = vadd.f32 %v2166, %v2326
    %v2328 = vpop.f32.mrb[0].mxu0
    %v2329 = vadd.f32 %v2168, %v2328
    %v2330 = vpop.f32.mrb[0].mxu0
    %v2331 = vadd.f32 %v2170, %v2330
    %2332 = vmatprep.mubr.bf16.mxu0 %v236
    %2333 = vmatmul.mubr.bf16.gmra.mrb[0].mxu0 %v235
    %v2334 = vpop.f32.mrb[0].mxu0
    %v2335 = vadd.f32 %v2174, %v2334
    %v2336 = vpop.f32.mrb[0].mxu0
    %v2337 = vadd.f32 %v2176, %v2336
    %v2338 = vpop.f32.mrb[0].mxu0
    %v2339 = vadd.f32 %v2178, %v2338
    %v2340 = vpop.f32.mrb[0].mxu0
    %v2341 = vadd.f32 %v2180, %v2340
    %2342 = vmatprep.mubr.bf16.mxu0 %v242
    %2343 = vmatmul.mubr.bf16.gmra.mrb[0].mxu0 %v241
    %v2344 = vpop.f32.mrb[0].mxu0
    %v2345 = vadd.f32 %v2184, %v2344
    %v2346 = vpop.f32.mrb[0].mxu0
    %v2347 = vadd.f32 %v2186, %v2346
    %v2348 = vpop.f32.mrb[0].mxu0
    %v2349 = vadd.f32 %v2188, %v2348
    %v2350 = vpop.f32.mrb[0].mxu0
    %v2351 = vadd.f32 %v2190, %v2350
    %2352 = vmatprep.mubr.bf16.mxu0 %v248
    %2353 = vmatmul.mubr.bf16.gmra.mrb[0].mxu0 %v247
    %v2354 = vpop.f32.mrb[0].mxu0
    %v2355 = vadd.f32 %v2194, %v2354
    %v2356 = vpop.f32.mrb[0].mxu0
    %v2357 = vadd.f32 %v2196, %v2356
    %v2358 = vpop.f32.mrb[0].mxu0
    %v2359 = vadd.f32 %v2198, %v2358
    %v2360 = vpop.f32.mrb[0].mxu0
    %v2361 = vadd.f32 %v2200, %v2360
    %2362 = vmatprep.mubr.bf16.mxu0 %v254
    %2363 = vmatmul.mubr.bf16.gmra.mrb[0].mxu0 %v253
    %v2364 = vpop.f32.mrb[0].mxu0
    %v2365 = vadd.f32 %v2204, %v2364
    %v2366 = vpop.f32.mrb[0].mxu0
    %v2367 = vadd.f32 %v2206, %v2366
    %v2368 = vpop.f32.mrb[0].mxu0
    %v2369 = vadd.f32 %v2208, %v2368
    %v2370 = vpop.f32.mrb[0].mxu0
    %v2371 = vadd.f32 %v2210, %v2370
    %2372 = vmatprep.mubr.bf16.mxu0 %v260
    %2373 = vmatmul.mubr.bf16.gmra.mrb[0].mxu0 %v259
    %v2374 = vpop.f32.mrb[0].mxu0
    %v2375 = vadd.f32 %v2214, %v2374
    %v2376 = vpop.f32.mrb[0].mxu0
    %v2377 = vadd.f32 %v2216, %v2376
    %v2378 = vpop.f32.mrb[0].mxu0
    %v2379 = vadd.f32 %v2218, %v2378
    %v2380 = vpop.f32.mrb[0].mxu0
    %v2381 = vadd.f32 %v2220, %v2380
    %2382 = vmatprep.mubr.bf16.mxu0 %v266
    %2383 = vmatmul.mubr.bf16.gmra.mrb[0].mxu0 %v265
    %v2384 = vpop.f32.mrb[0].mxu0
    %v2385 = vadd.f32 %v2224, %v2384
    %v2386 = vpop.f32.mrb[0].mxu0
    %v2387 = vadd.f32 %v2226, %v2386
    %v2388 = vpop.f32.mrb[0].mxu0
    %v2389 = vadd.f32 %v2228, %v2388
    %v2390 = vpop.f32.mrb[0].mxu0
    %v2391 = vadd.f32 %v2230, %v2390
    %2392 = vmatprep.mubr.bf16.mxu0 %v272
    %2393 = vmatmul.mubr.bf16.gmra.mrb[0].mxu0 %v271
    %v2394 = vpop.f32.mrb[0].mxu0
    %v2395 = vadd.f32 %v2234, %v2394
    %v2396 = vpop.f32.mrb[0].mxu0
    %v2397 = vadd.f32 %v2236, %v2396
    %v2398 = vpop.f32.mrb[0].mxu0
    %v2399 = vadd.f32 %v2238, %v2398
    %v2400 = vpop.f32.mrb[0].mxu0
    %v2401 = vadd.f32 %v2240, %v2400
    %2402 = vmatprep.mubr.bf16.mxu0 %v278
    %2403 = vmatmul.mubr.bf16.gmra.mrb[0].mxu0 %v277
    %v2404 = vpop.f32.mrb[0].mxu0
    %v2405 = vadd.f32 %v2244, %v2404
    %v2406 = vpop.f32.mrb[0].mxu0
    %v2407 = vadd.f32 %v2246, %v2406
    %v2408 = vpop.f32.mrb[0].mxu0
    %v2409 = vadd.f32 %v2248, %v2408
    %v2410 = vpop.f32.mrb[0].mxu0
    %v2411 = vadd.f32 %v2250, %v2410
    %2412 = vmatprep.mubr.bf16.mxu0 %v284
    %2413 = vmatmul.mubr.bf16.gmra.mrb[0].mxu0 %v283
    %v2414 = vpop.f32.mrb[0].mxu0
    %v2415 = vadd.f32 %v2254, %v2414
    %v2416 = vpop.f32.mrb[0].mxu0
    %v2417 = vadd.f32 %v2256, %v2416
    %v2418 = vpop.f32.mrb[0].mxu0
    %v2419 = vadd.f32 %v2258, %v2418
    %v2420 = vpop.f32.mrb[0].mxu0
    %v2421 = vadd.f32 %v2260, %v2420
    %2422 = vmatprep.mubr.bf16.mxu0 %v290
    %2423 = vmatmul.mubr.bf16.gmra.mrb[0].mxu0 %v289
    %v2424 = vpop.f32.mrb[0].mxu0
    %v2425 = vadd.f32 %v2264, %v2424
    %v2426 = vpop.f32.mrb[0].mxu0
    %v2427 = vadd.f32 %v2266, %v2426
    %v2428 = vpop.f32.mrb[0].mxu0
    %v2429 = vpop.f32.mrb[0].mxu0
    %2430 = vdwg.mxu0
    %v2431 = vmax.f32 %v1822, 0.0
    %v2432 = vmax.f32 %v1824, 0.0
    %v2433 = vmax.f32 %v2305, 0.0
    %v2434 = vmax.f32 %v2307, 0.0
    %v2435 = vmax.f32 %v1826, 0.0
    %v2436 = vmax.f32 %v1828, 0.0
    %v2437 = vmax.f32 %v2309, 0.0
    %v2438 = vmax.f32 %v2311, 0.0
    %v2439 = vmax.f32 %v1832, 0.0
    %v2440 = vmax.f32 %v1834, 0.0
    %v2441 = vmax.f32 %v2315, 0.0
    %v2442 = vmax.f32 %v2317, 0.0
    %v2443 = vmax.f32 %v1836, 0.0
    %v2444 = vmax.f32 %v1838, 0.0
    %v2445 = vmax.f32 %v2319, 0.0
    %v2446 = vmax.f32 %v2321, 0.0
    %v2447 = vmax.f32 %v1842, 0.0
    %v2448 = vmax.f32 %v1844, 0.0
    %v2449 = vmax.f32 %v2325, 0.0
    %v2450 = vmax.f32 %v2327, 0.0
    %v2451 = vmax.f32 %v1846, 0.0
    %v2452 = vmax.f32 %v1848, 0.0
    %v2453 = vmax.f32 %v2329, 0.0
    %v2454 = vmax.f32 %v2331, 0.0
    %v2455 = vmax.f32 %v1852, 0.0
    %v2456 = vmax.f32 %v1854, 0.0
    %v2457 = vmax.f32 %v2335, 0.0
    %v2458 = vmax.f32 %v2337, 0.0
    %v2459 = vmax.f32 %v1856, 0.0
    %v2460 = vmax.f32 %v1858, 0.0
    %v2461 = vmax.f32 %v2339, 0.0
    %v2462 = vmax.f32 %v2341, 0.0
    %v2463 = vmax.f32 %v1862, 0.0
    %v2464 = vmax.f32 %v1864, 0.0
    %v2465 = vmax.f32 %v2345, 0.0
    %v2466 = vmax.f32 %v2347, 0.0
    %v2467 = vmax.f32 %v1866, 0.0
    %v2468 = vmax.f32 %v1868, 0.0
    %v2469 = vmax.f32 %v2349, 0.0
    %v2470 = vmax.f32 %v2351, 0.0
    %v2471 = vmax.f32 %v1872, 0.0
    %v2472 = vmax.f32 %v1874, 0.0
    %v2473 = vmax.f32 %v2355, 0.0
    %v2474 = vmax.f32 %v2357, 0.0
    %v2475 = vmax.f32 %v1876, 0.0
    %v2476 = vmax.f32 %v1878, 0.0
    %v2477 = vmax.f32 %v2359, 0.0
    %v2478 = vmax.f32 %v2361, 0.0
    %v2479 = vmax.f32 %v1882, 0.0
    %v2480 = vmax.f32 %v1884, 0.0
    %v2481 = vmax.f32 %v2365, 0.0
    %v2482 = vmax.f32 %v2367, 0.0
    %v2483 = vmax.f32 %v1886, 0.0
    %v2484 = vmax.f32 %v1888, 0.0
    %v2485 = vmax.f32 %v2369, 0.0
    %v2486 = vmax.f32 %v2371, 0.0
    %v2487 = vmax.f32 %v1892, 0.0
    %v2488 = vmax.f32 %v1894, 0.0
    %v2489 = vmax.f32 %v2375, 0.0
    %v2490 = vmax.f32 %v2377, 0.0
    %v2491 = vmax.f32 %v1896, 0.0
    %v2492 = vmax.f32 %v1898, 0.0
    %v2493 = vmax.f32 %v2379, 0.0
    %v2494 = vmax.f32 %v2381, 0.0
    %v2495 = vmax.f32 %v1902, 0.0
    %v2496 = vmax.f32 %v1904, 0.0
    %v2497 = vmax.f32 %v2385, 0.0
    %v2498 = vmax.f32 %v2387, 0.0
    %v2499 = vmax.f32 %v1906, 0.0
    %v2500 = vmax.f32 %v1908, 0.0
    %v2501 = vmax.f32 %v2389, 0.0
    %v2502 = vmax.f32 %v2391, 0.0
    %v2503 = vmax.f32 %v1912, 0.0
    %v2504 = vmax.f32 %v1914, 0.0
    %v2505 = vmax.f32 %v2395, 0.0
    %v2506 = vmax.f32 %v2397, 0.0
    %v2507 = vmax.f32 %v1916, 0.0
    %v2508 = vmax.f32 %v1918, 0.0
    %v2509 = vmax.f32 %v2399, 0.0
    %v2510 = vmax.f32 %v2401, 0.0
    %v2511 = vmax.f32 %v1922, 0.0
    %v2512 = vmax.f32 %v1924, 0.0
    %v2513 = vmax.f32 %v2405, 0.0
    %v2514 = vmax.f32 %v2407, 0.0
    %v2515 = vmax.f32 %v1926, 0.0
    %v2516 = vmax.f32 %v1928, 0.0
    %v2517 = vmax.f32 %v2409, 0.0
    %v2518 = vmax.f32 %v2411, 0.0
    %v2519 = vmax.f32 %v1932, 0.0
    %v2520 = vmax.f32 %v1934, 0.0
    %v2521 = vmax.f32 %v2415, 0.0
    %v2522 = vmax.f32 %v2417, 0.0
    %v2523 = vmax.f32 %v1936, 0.0
    %v2524 = vmax.f32 %v1938, 0.0
    %v2525 = vmax.f32 %v2419, 0.0
    %v2526 = vmax.f32 %v2421, 0.0
    %v2527 = vmax.f32 %v1942, 0.0
    %v2528 = vmax.f32 %v1944, 0.0
    %v2529 = vmax.f32 %v2425, 0.0
    %v2530 = vmax.f32 %v2427, 0.0
    %v2531 = vpack.c.bf16 %v2435, %v2431
    %v2532 = vpack.c.bf16 %v2436, %v2432
    %v2533 = vpack.c.bf16 %v2437, %v2433
    %v2534 = vpack.c.bf16 %v2438, %v2434
    %v2535 = vpack.c.bf16 %v2443, %v2439
    %v2536 = vpack.c.bf16 %v2444, %v2440
    %v2537 = vpack.c.bf16 %v2445, %v2441
    %v2538 = vpack.c.bf16 %v2446, %v2442
    %v2539 = vpack.c.bf16 %v2451, %v2447
    %v2540 = vpack.c.bf16 %v2452, %v2448
    %v2541 = vpack.c.bf16 %v2453, %v2449
    %v2542 = vpack.c.bf16 %v2454, %v2450
    %v2543 = vpack.c.bf16 %v2459, %v2455
    %v2544 = vpack.c.bf16 %v2460, %v2456
    %v2545 = vpack.c.bf16 %v2461, %v2457
    %v2546 = vpack.c.bf16 %v2462, %v2458
    %v2547 = vpack.c.bf16 %v2467, %v2463
    %v2548 = vpack.c.bf16 %v2468, %v2464
    %v2549 = vpack.c.bf16 %v2469, %v2465
    %v2550 = vpack.c.bf16 %v2470, %v2466
    %v2551 = vpack.c.bf16 %v2475, %v2471
    %v2552 = vpack.c.bf16 %v2476, %v2472
    %v2553 = vpack.c.bf16 %v2477, %v2473
    %v2554 = vpack.c.bf16 %v2478, %v2474
    %v2555 = vpack.c.bf16 %v2483, %v2479
    %v2556 = vpack.c.bf16 %v2484, %v2480
    %v2557 = vpack.c.bf16 %v2485, %v2481
    %v2558 = vpack.c.bf16 %v2486, %v2482
    %v2559 = vpack.c.bf16 %v2491, %v2487
    %v2560 = vpack.c.bf16 %v2492, %v2488
    %v2561 = vpack.c.bf16 %v2493, %v2489
    %v2562 = vpack.c.bf16 %v2494, %v2490
    %v2563 = vpack.c.bf16 %v2499, %v2495
    %v2564 = vpack.c.bf16 %v2500, %v2496
    %v2565 = vpack.c.bf16 %v2501, %v2497
    %v2566 = vpack.c.bf16 %v2502, %v2498
    %v2567 = vpack.c.bf16 %v2507, %v2503
    %v2568 = vpack.c.bf16 %v2508, %v2504
    %v2569 = vpack.c.bf16 %v2509, %v2505
    %v2570 = vpack.c.bf16 %v2510, %v2506
    %v2571 = vpack.c.bf16 %v2515, %v2511
    %v2572 = vpack.c.bf16 %v2516, %v2512
    %v2573 = vpack.c.bf16 %v2517, %v2513
    %v2574 = vpack.c.bf16 %v2518, %v2514
    %v2575 = vpack.c.bf16 %v2523, %v2519
    %v2576 = vpack.c.bf16 %v2524, %v2520
    %v2577 = vpack.c.bf16 %v2525, %v2521
    %v2578 = vpack.c.bf16 %v2526, %v2522
    %v2579 = vpack.c.bf16 %v2527, %v2527
    %v2580 = vpack.c.bf16 %v2528, %v2528
    %v2581 = vpack.c.bf16 %v2529, %v2529
    %v2582 = vpack.c.bf16 %v2530, %v2530
    %v2583 = vld [vmem:[#allocation7] sm:$0xf]
    %v2584 = vld [vmem:[#allocation7 + $0x4] sm:$0xf]
    %v2585 = vld [vmem:[#allocation7 + $0x8] sm:$0xf]
    %v2586 = vld [vmem:[#allocation7 + $0xc] sm:$0xf]
    %v2587 = vld [vmem:[#allocation7 + $0x10] sm:$0xf]
    %v2588 = vld [vmem:[#allocation7 + $0x14] sm:$0xf]
    %v2589 = vld [vmem:[#allocation7 + $0x18] sm:$0xf]
    %v2590 = vld [vmem:[#allocation7 + $0x1c] sm:$0xf]
    %v2591 = vld [vmem:[#allocation7 + $0x20] sm:$0xf]
    %v2592 = vld [vmem:[#allocation7 + $0x24] sm:$0xf]
    %v2593 = vld [vmem:[#allocation7 + $0x28] sm:$0xf]
    %v2594 = vld [vmem:[#allocation7 + $0x2c] sm:$0xf]
    %v2595 = vld [vmem:[#allocation7 + $0x30] sm:$0xf]
    %v2596 = vld [vmem:[#allocation7 + $0x34] sm:$0xf]
    %v2597 = vld [vmem:[#allocation7 + $0x38] sm:$0xf]
    %v2598 = vld [vmem:[#allocation7 + $0x3c] sm:$0xf]
    %v2599 = vld [vmem:[#allocation7 + $0x40] sm:$0xf]
    %v2600 = vld [vmem:[#allocation7 + $0x44] sm:$0xf]
    %v2601 = vld [vmem:[#allocation7 + $0x48] sm:$0xf]
    %v2602 = vld [vmem:[#allocation7 + $0x4c] sm:$0xf]
    %v2603 = vld [vmem:[#allocation7 + $0x50] sm:$0xf]
    %v2604 = vld [vmem:[#allocation7 + $0x54] sm:$0xf]
    %v2605 = vld [vmem:[#allocation7 + $0x58] sm:$0xf]
    %v2606 = vld [vmem:[#allocation7 + $0x5c] sm:$0xf]
    %v2607 = vld [vmem:[#allocation7 + $0x60] sm:$0xf]
    %v2608 = vld [vmem:[#allocation7 + $0x64] sm:$0xf]
    %v2609 = vld [vmem:[#allocation7 + $0x68] sm:$0xf]
    %v2610 = vld [vmem:[#allocation7 + $0x6c] sm:$0xf]
    %v2611 = vld [vmem:[#allocation7 + $0x70] sm:$0xf]
    %v2612 = vld [vmem:[#allocation7 + $0x74] sm:$0xf]
    %v2613 = vld [vmem:[#allocation7 + $0x78] sm:$0xf]
    %v2614 = vld [vmem:[#allocation7 + $0x7c] sm:$0xf]
    %v2615 = vld [vmem:[#allocation7 + $0x80] sm:$0xf]
    %v2616 = vld [vmem:[#allocation7 + $0x84] sm:$0xf]
    %v2617 = vld [vmem:[#allocation7 + $0x88] sm:$0xf]
    %v2618 = vld [vmem:[#allocation7 + $0x8c] sm:$0xf]
    %v2619 = vld [vmem:[#allocation7 + $0x90] sm:$0xf]
    %v2620 = vld [vmem:[#allocation7 + $0x94] sm:$0xf]
    %v2621 = vld [vmem:[#allocation7 + $0x98] sm:$0xf]
    %v2622 = vld [vmem:[#allocation7 + $0x9c] sm:$0xf]
    %v2623 = vld [vmem:[#allocation7 + $0xa0] sm:$0xf]
    %v2624 = vld [vmem:[#allocation7 + $0xa4] sm:$0xf]
    %v2625 = vld [vmem:[#allocation7 + $0xa8] sm:$0xf]
    %v2626 = vld [vmem:[#allocation7 + $0xac] sm:$0xf]
    %v2627 = vld [vmem:[#allocation7 + $0xb0] sm:$0xf]
    %v2628 = vld [vmem:[#allocation7 + $0xb4] sm:$0xf]
    %v2629 = vld [vmem:[#allocation7 + $0xb8] sm:$0xf]
    %v2630 = vld [vmem:[#allocation7 + $0xbc] sm:$0xf]
    %v2631 = vld [vmem:[#allocation7 + $0xc0] sm:$0xf]
    %v2632 = vld [vmem:[#allocation7 + $0xc4] sm:$0xf]
    %v2633 = vld [vmem:[#allocation7 + $0xc8] sm:$0xf]
    %v2634 = vld [vmem:[#allocation7 + $0xcc] sm:$0xf]
    %v2635 = vld [vmem:[#allocation7 + $0xd0] sm:$0xf]
    %v2636 = vld [vmem:[#allocation7 + $0xd4] sm:$0xf]
    %v2637 = vld [vmem:[#allocation7 + $0xd8] sm:$0xf]
    %v2638 = vld [vmem:[#allocation7 + $0xdc] sm:$0xf]
    %v2639 = vld [vmem:[#allocation7 + $0xe0] sm:$0xf]
    %v2640 = vld [vmem:[#allocation7 + $0xe4] sm:$0xf]
    %v2641 = vld [vmem:[#allocation7 + $0xe8] sm:$0xf]
    %v2642 = vld [vmem:[#allocation7 + $0xec] sm:$0xf]
    %v2643 = vld [vmem:[#allocation7 + $0xf0] sm:$0xf]
    %v2644 = vld [vmem:[#allocation7 + $0xf4] sm:$0xf]
    %v2645 = vld [vmem:[#allocation7 + $0xf8] sm:$0xf]
    %v2646 = vld [vmem:[#allocation7 + $0xfc] sm:$0xf]
    %v2647 = vld [vmem:[%s4] sm:$0x1]
    %v2649 = vlaneseq
    %v2650 = vshrl.u32 %v2649, 7
    %v2651 = vsub.s32 0, %v2650
    %v2652 = vrot.slane %v2647, %v2651
    %v2718 = vunpack.c.l.b16 %v2583
    %v2719 = vunpack.c.l.b16 %v2584
    %v2720 = vunpack.c.l.b16 %v2585
    %v2721 = vunpack.c.l.b16 %v2586
    %v2722 = vunpack.c.l.b16 %v2587
    %v2723 = vunpack.c.l.b16 %v2588
    %v2724 = vunpack.c.l.b16 %v2589
    %v2725 = vunpack.c.l.b16 %v2590
    %v2726 = vunpack.c.l.b16 %v2591
    %v2727 = vunpack.c.l.b16 %v2592
    %v2728 = vunpack.c.l.b16 %v2593
    %v2729 = vunpack.c.l.b16 %v2594
    %v2730 = vunpack.c.l.b16 %v2595
    %v2731 = vunpack.c.l.b16 %v2596
    %v2732 = vunpack.c.l.b16 %v2597
    %v2733 = vunpack.c.l.b16 %v2598
    %v2734 = vunpack.c.l.b16 %v2599
    %v2735 = vunpack.c.l.b16 %v2600
    %v2736 = vunpack.c.l.b16 %v2601
    %v2737 = vunpack.c.l.b16 %v2602
    %v2738 = vunpack.c.l.b16 %v2603
    %v2739 = vunpack.c.l.b16 %v2604
    %v2740 = vunpack.c.l.b16 %v2605
    %v2741 = vunpack.c.l.b16 %v2606
    %v2742 = vunpack.c.l.b16 %v2607
    %v2743 = vunpack.c.l.b16 %v2608
    %v2744 = vunpack.c.l.b16 %v2609
    %v2745 = vunpack.c.l.b16 %v2610
    %v2746 = vunpack.c.l.b16 %v2611
    %v2747 = vunpack.c.l.b16 %v2612
    %v2748 = vunpack.c.l.b16 %v2613
    %v2749 = vunpack.c.l.b16 %v2614
    %v2750 = vunpack.c.l.b16 %v2615
    %v2751 = vunpack.c.l.b16 %v2616
    %v2752 = vunpack.c.l.b16 %v2617
    %v2753 = vunpack.c.l.b16 %v2618
    %v2754 = vunpack.c.l.b16 %v2619
    %v2755 = vunpack.c.l.b16 %v2620
    %v2756 = vunpack.c.l.b16 %v2621
    %v2757 = vunpack.c.l.b16 %v2622
    %v2758 = vunpack.c.l.b16 %v2623
    %v2759 = vunpack.c.l.b16 %v2624
    %v2760 = vunpack.c.l.b16 %v2625
    %v2761 = vunpack.c.l.b16 %v2626
    %v2762 = vunpack.c.l.b16 %v2627
    %v2763 = vunpack.c.l.b16 %v2628
    %v2764 = vunpack.c.l.b16 %v2629
    %v2765 = vunpack.c.l.b16 %v2630
    %v2766 = vunpack.c.l.b16 %v2631
    %v2767 = vunpack.c.l.b16 %v2632
    %v2768 = vunpack.c.l.b16 %v2633
    %v2769 = vunpack.c.l.b16 %v2634
    %v2770 = vunpack.c.l.b16 %v2635
    %v2771 = vunpack.c.l.b16 %v2636
    %v2772 = vunpack.c.l.b16 %v2637
    %v2773 = vunpack.c.l.b16 %v2638
    %v2774 = vunpack.c.l.b16 %v2639
    %v2775 = vunpack.c.l.b16 %v2640
    %v2776 = vunpack.c.l.b16 %v2641
    %v2777 = vunpack.c.l.b16 %v2642
    %v2778 = vunpack.c.l.b16 %v2643
    %v2779 = vunpack.c.l.b16 %v2644
    %v2780 = vunpack.c.l.b16 %v2645
    %v2781 = vunpack.c.l.b16 %v2646
    %v2782 = vpack.c.b16 %v2719, %v2718
    %v2783 = vpack.c.b16 %v2721, %v2720
    %v2784 = vpack.c.b16 %v2723, %v2722
    %v2785 = vpack.c.b16 %v2725, %v2724
    %v2786 = vpack.c.b16 %v2727, %v2726
    %v2787 = vpack.c.b16 %v2729, %v2728
    %v2788 = vpack.c.b16 %v2731, %v2730
    %v2789 = vpack.c.b16 %v2733, %v2732
    %v2790 = vpack.c.b16 %v2735, %v2734
    %v2791 = vpack.c.b16 %v2737, %v2736
    %v2792 = vpack.c.b16 %v2739, %v2738
    %v2793 = vpack.c.b16 %v2741, %v2740
    %v2794 = vpack.c.b16 %v2743, %v2742
    %v2795 = vpack.c.b16 %v2745, %v2744
    %v2796 = vpack.c.b16 %v2747, %v2746
    %v2797 = vpack.c.b16 %v2749, %v2748
    %v2798 = vpack.c.b16 %v2751, %v2750
    %v2799 = vpack.c.b16 %v2753, %v2752
    %v2800 = vpack.c.b16 %v2755, %v2754
    %v2801 = vpack.c.b16 %v2757, %v2756
    %v2802 = vpack.c.b16 %v2759, %v2758
    %v2803 = vpack.c.b16 %v2761, %v2760
    %v2804 = vpack.c.b16 %v2763, %v2762
    %v2805 = vpack.c.b16 %v2765, %v2764
    %v2806 = vpack.c.b16 %v2767, %v2766
    %v2807 = vpack.c.b16 %v2769, %v2768
    %v2808 = vpack.c.b16 %v2771, %v2770
    %v2809 = vpack.c.b16 %v2773, %v2772
    %v2810 = vpack.c.b16 %v2775, %v2774
    %v2811 = vpack.c.b16 %v2777, %v2776
    %v2812 = vpack.c.b16 %v2779, %v2778
    %v2813 = vpack.c.b16 %v2781, %v2780
    %2846 = vmatprep.subr.bf16.mxu0 0
    %2847 = vmatpush1.bf16.msra.mxu0 %v2782
    %2848 = vmatprep.subr.bf16.mxu0 0
    %2849 = vmatpush1.bf16.msra.mxu0 %v2783
    %2850 = vmatprep.subr.bf16.mxu0 0
    %2851 = vmatpush1.bf16.msra.mxu0 %v2784
    %2852 = vmatprep.subr.bf16.mxu0 0
    %2853 = vmatpush1.bf16.msra.mxu0 %v2785
    %2854 = vmatprep.subr.bf16.mxu0 0
    %2855 = vmatpush1.bf16.msra.mxu0 %v2786
    %2856 = vmatprep.subr.bf16.mxu0 0
    %2857 = vmatpush1.bf16.msra.mxu0 %v2787
    %2858 = vmatprep.subr.bf16.mxu0 0
    %2859 = vmatpush1.bf16.msra.mxu0 %v2788
    %2860 = vmatprep.subr.bf16.mxu0 0
    %2861 = vmatpush1.bf16.msra.mxu0 %v2789
    %2862 = vmatprep.subr.bf16.mxu0 0
    %2863 = vmatpush1.bf16.msra.mxu0 %v2790
    %2864 = vmatprep.subr.bf16.mxu0 0
    %2865 = vmatpush1.bf16.msra.mxu0 %v2791
    %2866 = vmatprep.subr.bf16.mxu0 0
    %2867 = vmatpush1.bf16.msra.mxu0 %v2792
    %2868 = vmatprep.subr.bf16.mxu0 0
    %2869 = vmatpush1.bf16.msra.mxu0 %v2793
    %2870 = vmatprep.subr.bf16.mxu0 0
    %2871 = vmatpush1.bf16.msra.mxu0 %v2794
    %2872 = vmatprep.subr.bf16.mxu0 0
    %2873 = vmatpush1.bf16.msra.mxu0 %v2795
    %2874 = vmatprep.subr.bf16.mxu0 0
    %2875 = vmatpush1.bf16.msra.mxu0 %v2796
    %2876 = vmatprep.subr.bf16.mxu0 0
    %2877 = vmatpush1.bf16.msra.mxu0 %v2797
    %2878 = vmatprep.mubr.bf16.mxu0 %v2532
    %2879 = vmatmul.mubr.bf16.gmra.mrb[0].mxu0 %v2531
    %v2880 = vpop.f32.mrb[0].mxu0
    %v2881 = vadd.f32 %v2652, %v2880
    %v2882 = vpop.f32.mrb[0].mxu0
    %v2883 = vpop.f32.mrb[0].mxu0
    %v2884 = vadd.f32 %v2652, %v2883
    %v2885 = vpop.f32.mrb[0].mxu0
    %2886 = vmatprep.mubr.bf16.mxu0 %v2536
    %2887 = vmatmul.mubr.bf16.gmra.mrb[0].mxu0 %v2535
    %v2888 = vpop.f32.mrb[0].mxu0
    %v2889 = vadd.f32 %v2652, %v2888
    %v2890 = vpop.f32.mrb[0].mxu0
    %v2891 = vpop.f32.mrb[0].mxu0
    %v2892 = vadd.f32 %v2652, %v2891
    %v2893 = vpop.f32.mrb[0].mxu0
    %2894 = vmatprep.mubr.bf16.mxu0 %v2540
    %2895 = vmatmul.mubr.bf16.gmra.mrb[0].mxu0 %v2539
    %v2896 = vpop.f32.mrb[0].mxu0
    %v2897 = vadd.f32 %v2652, %v2896
    %v2898 = vpop.f32.mrb[0].mxu0
    %v2899 = vpop.f32.mrb[0].mxu0
    %v2900 = vadd.f32 %v2652, %v2899
    %v2901 = vpop.f32.mrb[0].mxu0
    %2902 = vmatprep.mubr.bf16.mxu0 %v2544
    %2903 = vmatmul.mubr.bf16.gmra.mrb[0].mxu0 %v2543
    %v2904 = vpop.f32.mrb[0].mxu0
    %v2905 = vadd.f32 %v2652, %v2904
    %v2906 = vpop.f32.mrb[0].mxu0
    %v2907 = vpop.f32.mrb[0].mxu0
    %v2908 = vadd.f32 %v2652, %v2907
    %v2909 = vpop.f32.mrb[0].mxu0
    %2910 = vmatprep.mubr.bf16.mxu0 %v2548
    %2911 = vmatmul.mubr.bf16.gmra.mrb[0].mxu0 %v2547
    %v2912 = vpop.f32.mrb[0].mxu0
    %v2913 = vadd.f32 %v2652, %v2912
    %v2914 = vpop.f32.mrb[0].mxu0
    %v2915 = vpop.f32.mrb[0].mxu0
    %v2916 = vadd.f32 %v2652, %v2915
    %v2917 = vpop.f32.mrb[0].mxu0
    %2918 = vmatprep.mubr.bf16.mxu0 %v2552
    %2919 = vmatmul.mubr.bf16.gmra.mrb[0].mxu0 %v2551
    %v2920 = vpop.f32.mrb[0].mxu0
    %v2921 = vadd.f32 %v2652, %v2920
    %v2922 = vpop.f32.mrb[0].mxu0
    %v2923 = vpop.f32.mrb[0].mxu0
    %v2924 = vadd.f32 %v2652, %v2923
    %v2925 = vpop.f32.mrb[0].mxu0
    %2926 = vmatprep.mubr.bf16.mxu0 %v2556
    %2927 = vmatmul.mubr.bf16.gmra.mrb[0].mxu0 %v2555
    %v2928 = vpop.f32.mrb[0].mxu0
    %v2929 = vadd.f32 %v2652, %v2928
    %v2930 = vpop.f32.mrb[0].mxu0
    %v2931 = vpop.f32.mrb[0].mxu0
    %v2932 = vadd.f32 %v2652, %v2931
    %v2933 = vpop.f32.mrb[0].mxu0
    %2934 = vmatprep.mubr.bf16.mxu0 %v2560
    %2935 = vmatmul.mubr.bf16.gmra.mrb[0].mxu0 %v2559
    %v2936 = vpop.f32.mrb[0].mxu0
    %v2937 = vadd.f32 %v2652, %v2936
    %v2938 = vpop.f32.mrb[0].mxu0
    %v2939 = vpop.f32.mrb[0].mxu0
    %v2940 = vadd.f32 %v2652, %v2939
    %v2941 = vpop.f32.mrb[0].mxu0
    %2942 = vmatprep.mubr.bf16.mxu0 %v2564
    %2943 = vmatmul.mubr.bf16.gmra.mrb[0].mxu0 %v2563
    %v2944 = vpop.f32.mrb[0].mxu0
    %v2945 = vadd.f32 %v2652, %v2944
    %v2946 = vpop.f32.mrb[0].mxu0
    %v2947 = vpop.f32.mrb[0].mxu0
    %v2948 = vadd.f32 %v2652, %v2947
    %v2949 = vpop.f32.mrb[0].mxu0
    %2950 = vmatprep.mubr.bf16.mxu0 %v2568
    %2951 = vmatmul.mubr.bf16.gmra.mrb[0].mxu0 %v2567
    %v2952 = vpop.f32.mrb[0].mxu0
    %v2953 = vadd.f32 %v2652, %v2952
    %v2954 = vpop.f32.mrb[0].mxu0
    %v2955 = vpop.f32.mrb[0].mxu0
    %v2956 = vadd.f32 %v2652, %v2955
    %v2957 = vpop.f32.mrb[0].mxu0
    %2958 = vmatprep.mubr.bf16.mxu0 %v2572
    %2959 = vmatmul.mubr.bf16.gmra.mrb[0].mxu0 %v2571
    %v2960 = vpop.f32.mrb[0].mxu0
    %v2961 = vadd.f32 %v2652, %v2960
    %v2962 = vpop.f32.mrb[0].mxu0
    %v2963 = vpop.f32.mrb[0].mxu0
    %v2964 = vadd.f32 %v2652, %v2963
    %v2965 = vpop.f32.mrb[0].mxu0
    %2966 = vmatprep.mubr.bf16.mxu0 %v2576
    %2967 = vmatmul.mubr.bf16.gmra.mrb[0].mxu0 %v2575
    %v2968 = vpop.f32.mrb[0].mxu0
    %v2969 = vadd.f32 %v2652, %v2968
    %v2970 = vpop.f32.mrb[0].mxu0
    %v2971 = vpop.f32.mrb[0].mxu0
    %v2972 = vadd.f32 %v2652, %v2971
    %v2973 = vpop.f32.mrb[0].mxu0
    %2974 = vmatprep.mubr.bf16.mxu0 %v2580
    %2975 = vmatmul.mubr.bf16.gmra.mrb[0].mxu0 %v2579
    %v2976 = vpop.f32.mrb[0].mxu0
    %v2977 = vadd.f32 %v2652, %v2976
    %v2978 = vpop.f32.mrb[0].mxu0
    %v2979 = vpop.f32.mrb[0].mxu0
    %v2980 = vpop.f32.mrb[0].mxu0
    %2981 = vdwg.mxu0
    %2982 = vmatprep.subr.bf16.mxu0 0
    %2983 = vmatpush1.bf16.msra.mxu0 %v2798
    %2984 = vmatprep.subr.bf16.mxu0 0
    %2985 = vmatpush1.bf16.msra.mxu0 %v2799
    %2986 = vmatprep.subr.bf16.mxu0 0
    %2987 = vmatpush1.bf16.msra.mxu0 %v2800
    %2988 = vmatprep.subr.bf16.mxu0 0
    %2989 = vmatpush1.bf16.msra.mxu0 %v2801
    %2990 = vmatprep.subr.bf16.mxu0 0
    %2991 = vmatpush1.bf16.msra.mxu0 %v2802
    %2992 = vmatprep.subr.bf16.mxu0 0
    %2993 = vmatpush1.bf16.msra.mxu0 %v2803
    %2994 = vmatprep.subr.bf16.mxu0 0
    %2995 = vmatpush1.bf16.msra.mxu0 %v2804
    %2996 = vmatprep.subr.bf16.mxu0 0
    %2997 = vmatpush1.bf16.msra.mxu0 %v2805
    %2998 = vmatprep.subr.bf16.mxu0 0
    %2999 = vmatpush1.bf16.msra.mxu0 %v2806
    %3000 = vmatprep.subr.bf16.mxu0 0
    %3001 = vmatpush1.bf16.msra.mxu0 %v2807
    %3002 = vmatprep.subr.bf16.mxu0 0
    %3003 = vmatpush1.bf16.msra.mxu0 %v2808
    %3004 = vmatprep.subr.bf16.mxu0 0
    %3005 = vmatpush1.bf16.msra.mxu0 %v2809
    %3006 = vmatprep.subr.bf16.mxu0 0
    %3007 = vmatpush1.bf16.msra.mxu0 %v2810
    %3008 = vmatprep.subr.bf16.mxu0 0
    %3009 = vmatpush1.bf16.msra.mxu0 %v2811
    %3010 = vmatprep.subr.bf16.mxu0 0
    %3011 = vmatpush1.bf16.msra.mxu0 %v2812
    %3012 = vmatprep.subr.bf16.mxu0 0
    %3013 = vmatpush1.bf16.msra.mxu0 %v2813
    %3014 = vmatprep.mubr.bf16.mxu0 %v2534
    %3015 = vmatmul.mubr.bf16.gmra.mrb[0].mxu0 %v2533
    %v3016 = vpop.f32.mrb[0].mxu0
    %v3017 = vadd.f32 %v2881, %v3016
    %v3018 = vpop.f32.mrb[0].mxu0
    %v3019 = vpop.f32.mrb[0].mxu0
    %v3020 = vadd.f32 %v2884, %v3019
    %v3021 = vpop.f32.mrb[0].mxu0
    %3022 = vmatprep.mubr.bf16.mxu0 %v2538
    %3023 = vmatmul.mubr.bf16.gmra.mrb[0].mxu0 %v2537
    %v3024 = vpop.f32.mrb[0].mxu0
    %v3025 = vadd.f32 %v2889, %v3024
    %v3026 = vpop.f32.mrb[0].mxu0
    %v3027 = vpop.f32.mrb[0].mxu0
    %v3028 = vadd.f32 %v2892, %v3027
    %v3029 = vpop.f32.mrb[0].mxu0
    %3030 = vmatprep.mubr.bf16.mxu0 %v2542
    %3031 = vmatmul.mubr.bf16.gmra.mrb[0].mxu0 %v2541
    %v3032 = vpop.f32.mrb[0].mxu0
    %v3033 = vadd.f32 %v2897, %v3032
    %v3034 = vpop.f32.mrb[0].mxu0
    %v3035 = vpop.f32.mrb[0].mxu0
    %v3036 = vadd.f32 %v2900, %v3035
    %v3037 = vpop.f32.mrb[0].mxu0
    %3038 = vmatprep.mubr.bf16.mxu0 %v2546
    %3039 = vmatmul.mubr.bf16.gmra.mrb[0].mxu0 %v2545
    %v3040 = vpop.f32.mrb[0].mxu0
    %v3041 = vadd.f32 %v2905, %v3040
    %v3042 = vpop.f32.mrb[0].mxu0
    %v3043 = vpop.f32.mrb[0].mxu0
    %v3044 = vadd.f32 %v2908, %v3043
    %v3045 = vpop.f32.mrb[0].mxu0
    %3046 = vmatprep.mubr.bf16.mxu0 %v2550
    %3047 = vmatmul.mubr.bf16.gmra.mrb[0].mxu0 %v2549
    %v3048 = vpop.f32.mrb[0].mxu0
    %v3049 = vadd.f32 %v2913, %v3048
    %v3050 = vpop.f32.mrb[0].mxu0
    %v3051 = vpop.f32.mrb[0].mxu0
    %v3052 = vadd.f32 %v2916, %v3051
    %v3053 = vpop.f32.mrb[0].mxu0
    %3054 = vmatprep.mubr.bf16.mxu0 %v2554
    %3055 = vmatmul.mubr.bf16.gmra.mrb[0].mxu0 %v2553
    %v3056 = vpop.f32.mrb[0].mxu0
    %v3057 = vadd.f32 %v2921, %v3056
    %v3058 = vpop.f32.mrb[0].mxu0
    %v3059 = vpop.f32.mrb[0].mxu0
    %v3060 = vadd.f32 %v2924, %v3059
    %v3061 = vpop.f32.mrb[0].mxu0
    %3062 = vmatprep.mubr.bf16.mxu0 %v2558
    %3063 = vmatmul.mubr.bf16.gmra.mrb[0].mxu0 %v2557
    %v3064 = vpop.f32.mrb[0].mxu0
    %v3065 = vadd.f32 %v2929, %v3064
    %v3066 = vpop.f32.mrb[0].mxu0
    %v3067 = vpop.f32.mrb[0].mxu0
    %v3068 = vadd.f32 %v2932, %v3067
    %v3069 = vpop.f32.mrb[0].mxu0
    %3070 = vmatprep.mubr.bf16.mxu0 %v2562
    %3071 = vmatmul.mubr.bf16.gmra.mrb[0].mxu0 %v2561
    %v3072 = vpop.f32.mrb[0].mxu0
    %v3073 = vadd.f32 %v2937, %v3072
    %v3074 = vpop.f32.mrb[0].mxu0
    %v3075 = vpop.f32.mrb[0].mxu0
    %v3076 = vadd.f32 %v2940, %v3075
    %v3077 = vpop.f32.mrb[0].mxu0
    %3078 = vmatprep.mubr.bf16.mxu0 %v2566
    %3079 = vmatmul.mubr.bf16.gmra.mrb[0].mxu0 %v2565
    %v3080 = vpop.f32.mrb[0].mxu0
    %v3081 = vadd.f32 %v2945, %v3080
    %v3082 = vpop.f32.mrb[0].mxu0
    %v3083 = vpop.f32.mrb[0].mxu0
    %v3084 = vadd.f32 %v2948, %v3083
    %v3085 = vpop.f32.mrb[0].mxu0
    %3086 = vmatprep.mubr.bf16.mxu0 %v2570
    %3087 = vmatmul.mubr.bf16.gmra.mrb[0].mxu0 %v2569
    %v3088 = vpop.f32.mrb[0].mxu0
    %v3089 = vadd.f32 %v2953, %v3088
    %v3090 = vpop.f32.mrb[0].mxu0
    %v3091 = vpop.f32.mrb[0].mxu0
    %v3092 = vadd.f32 %v2956, %v3091
    %v3093 = vpop.f32.mrb[0].mxu0
    %3094 = vmatprep.mubr.bf16.mxu0 %v2574
    %3095 = vmatmul.mubr.bf16.gmra.mrb[0].mxu0 %v2573
    %v3096 = vpop.f32.mrb[0].mxu0
    %v3097 = vadd.f32 %v2961, %v3096
    %v3098 = vpop.f32.mrb[0].mxu0
    %v3099 = vpop.f32.mrb[0].mxu0
    %v3100 = vadd.f32 %v2964, %v3099
    %v3101 = vpop.f32.mrb[0].mxu0
    %3102 = vmatprep.mubr.bf16.mxu0 %v2578
    %3103 = vmatmul.mubr.bf16.gmra.mrb[0].mxu0 %v2577
    %v3104 = vpop.f32.mrb[0].mxu0
    %v3105 = vadd.f32 %v2969, %v3104
    %v3106 = vpop.f32.mrb[0].mxu0
    %v3107 = vpop.f32.mrb[0].mxu0
    %v3108 = vadd.f32 %v2972, %v3107
    %v3109 = vpop.f32.mrb[0].mxu0
    %3110 = vmatprep.mubr.bf16.mxu0 %v2582
    %3111 = vmatmul.mubr.bf16.gmra.mrb[0].mxu0 %v2581
    %v3112 = vpop.f32.mrb[0].mxu0
    %v3113 = vadd.f32 %v2977, %v3112
    %v3114 = vpop.f32.mrb[0].mxu0
    %v3115 = vpop.f32.mrb[0].mxu0
    %v3116 = vpop.f32.mrb[0].mxu0
    %3117 = vdwg.mxu0
    %3118 = vst [vmem:[#allocation8] sm:$0xff] %v3017
    %3119 = vst [vmem:[#allocation8 + $0x8] sm:$0xff] %v3020
    %3120 = vst [vmem:[#allocation8 + $0x10] sm:$0xff] %v3025
    %3121 = vst [vmem:[#allocation8 + $0x18] sm:$0xff] %v3028
    %3122 = vst [vmem:[#allocation8 + $0x20] sm:$0xff] %v3033
    %3123 = vst [vmem:[#allocation8 + $0x28] sm:$0xff] %v3036
    %3124 = vst [vmem:[#allocation8 + $0x30] sm:$0xff] %v3041
    %3125 = vst [vmem:[#allocation8 + $0x38] sm:$0xff] %v3044
    %3126 = vst [vmem:[#allocation8 + $0x40] sm:$0xff] %v3049
    %3127 = vst [vmem:[#allocation8 + $0x48] sm:$0xff] %v3052
    %3128 = vst [vmem:[#allocation8 + $0x50] sm:$0xff] %v3057
    %3129 = vst [vmem:[#allocation8 + $0x58] sm:$0xff] %v3060
    %3130 = vst [vmem:[#allocation8 + $0x60] sm:$0xff] %v3065
    %3131 = vst [vmem:[#allocation8 + $0x68] sm:$0xff] %v3068
    %3132 = vst [vmem:[#allocation8 + $0x70] sm:$0xff] %v3073
    %3133 = vst [vmem:[#allocation8 + $0x78] sm:$0xff] %v3076
    %3134 = vst [vmem:[#allocation8 + $0x80] sm:$0xff] %v3081
    %3135 = vst [vmem:[#allocation8 + $0x88] sm:$0xff] %v3084
    %3136 = vst [vmem:[#allocation8 + $0x90] sm:$0xff] %v3089
    %3137 = vst [vmem:[#allocation8 + $0x98] sm:$0xff] %v3092
    %3138 = vst [vmem:[#allocation8 + $0xa0] sm:$0xff] %v3097
    %3139 = vst [vmem:[#allocation8 + $0xa8] sm:$0xff] %v3100
    %3140 = vst [vmem:[#allocation8 + $0xb0] sm:$0xff] %v3105
    %3141 = vst [vmem:[#allocation8 + $0xb8] sm:$0xff] %v3108
    %3142 = vst [vmem:[#allocation8 + $0xc0] sm:$0xff] %v3113
    // Predicated region
    $region34: #{tpu_custom_call.1} parent=1 // pred_check
      _
    $region35: #{tpu_custom_call.1} parent=1 // pred_check_branch
      %3144 = sbr.rel (0) target = $region37
    $region36: #{tpu_custom_call.1} parent=1 // pred_region
      %s3146 = ssub.s32 3200, 3200
      %3147 = vsyncadd [#allocation4], %s3146
      %s3148 = sshll.u32 [#allocation8], 4
      %s3149 = int_to_ptr.vmem [resolvable:$true] %s3148
      %3154 = dma.vmem_to_hbm [thread:$0]  %s3149, 3200, %s5, [#allocation4], 128, 128, 8
    $region37: #{tpu_custom_call.1} parent=1 // pred_fallthru
      _
    // Predicated region
    $region38: #{tpu_custom_call.1} parent=1 // pred_check
      _
    $region39: #{tpu_custom_call.1} parent=1 // pred_check_branch
      %3156 = sbr.rel (0) target = $region41
    $region40: #{tpu_custom_call.1} parent=1 // pred_region
      %3157 = dma.done [#allocation4], 3200
    $region41: #{tpu_custom_call.1} parent=1 // pred_fallthru
      _
    %3158 = vsyncpa [#allocation3], 1
    %3159 = vsyncpa [#allocation6], 1
    %3160 = vsyncpa [#allocation4], 1

</llo_original>
